<compile_context>
chip_gen: v6e
topology: v6e:2x2x1
jax: 0.10.0
libtpu: 0.0.40
codegen_flags: <defaults>
</compile_context>

<pallas_src>
import functools

import jax
import jax.numpy as jnp
from jax import lax
from jax.experimental import pallas as pl
from jax.experimental.pallas import tpu as pltpu


# --------------------------------------------------------------------------------------
# VMEM budgeting (generation aware)
# --------------------------------------------------------------------------------------
def _vmem_capacity_bytes():
    try:
        info = pltpu.get_tpu_info()
        cap = getattr(info, "vmem_capacity_bytes", None)
        if cap:
            return int(cap)
    except Exception:
        pass
    return 64 << 20  # conservative default (v7x per-TC VMEM)


def _vmem_limit_bytes(need_bytes):
    cap = _vmem_capacity_bytes()
    hi = int(cap * 0.75)
    lo = min(16 << 20, hi)
    return int(max(min(int(need_bytes), hi), lo))


def _pick_pack_groups(groups, cg, max_lanes=512):
    """Largest divisor of `groups` whose packed width (pack_groups * cg) fits max_lanes."""
    best = 1
    for d in range(1, groups + 1):
        if groups % d == 0 and d * cg <= max_lanes:
            best = d
    return best


# --------------------------------------------------------------------------------------
# Fused qkv-projection + channel attention + output projection kernel
# --------------------------------------------------------------------------------------
def _fused_channel_attn_kernel(x_ref, wqkv_ref, bqkv_ref, wproj_ref, bproj_ref, mask_ref,
                               o_ref, *, n_tokens, use_bf16):
    # x_ref   : (1, N, C)        activation block for this batch element
    # wqkv_ref: (C, 3C)  bf16    resident qkv weight (in, out layout)
    # bqkv_ref: (1, 3C)  f32     resident qkv bias
    # wproj_ref:(C, C)   bf16    resident proj weight
    # bproj_ref:(1, C)   f32     resident proj bias
    # mask_ref: (pack_w, pack_w) f32 additive block-diagonal mask (0 in-group, -1e30 off)
    # o_ref   : (1, N, C)
    C = o_ref.shape[-1]
    cdt = jnp.bfloat16 if use_bf16 else jnp.float32
    # Scale uses the FULL token count (static), not a tile size.
    scale = float(n_tokens) ** -0.5
    pack_w = mask_ref.shape[0]
    n_packs = C // pack_w

    # --- fused qkv projection: the (N, 3C) tensor lives only in VMEM/vregs ---
    x = x_ref[0].astype(cdt)                                                  # (N, C)
    qkv = jnp.dot(x, wqkv_ref[...], preferred_element_type=jnp.float32)       # (N, 3C) f32
    qkv = qkv + bqkv_ref[...]
    # Channel layout matches reshape(B, N, 3, groups, cg): [q | k | v], groups contiguous.
    q = qkv[:, 0 * C:1 * C].astype(cdt)                                       # (N, C)
    k = qkv[:, 1 * C:2 * C].astype(cdt)
    v = qkv[:, 2 * C:3 * C].astype(cdt)

    neg_mask = mask_ref[...]                                                  # (pw, pw) f32
    y = None
    for p in range(n_packs):                        # static loop over lane-dense packs
        lo, hi = p * pack_w, (p + 1) * pack_w
        qp, kp, vp = q[:, lo:hi], k[:, lo:hi], v[:, lo:hi]                    # (N, pw)

        # s[i, j] = scale * sum_n q[n, i] k[n, j]  -- lane-dense packed over all groups
        s = lax.dot_general(qp, kp, (((0,), (0,)), ((), ())),
                            preferred_element_type=jnp.float32) * scale       # (pw, pw)
        s = s + neg_mask                            # block-diagonal mask -> per-group rows
        s = s - jnp.max(s, axis=-1, keepdims=True)  # stable softmax (in-group max)
        e = jnp.exp(s)                              # off-group entries underflow to 0
        pr = e * pl.reciprocal(jnp.sum(e, axis=-1, keepdims=True), approx=False)

        # out_p[n, i] = sum_j pr[i, j] v[n, j]  (exact block-diag apply, lane-dense)
        out_p = lax.dot_general(vp, pr.astype(cdt), (((1,), (1,)), ((), ())),
                                preferred_element_type=jnp.float32)           # (N, pw)

        # Fused proj: accumulate this pack's contribution (no concat needed).
        contrib = jnp.dot(out_p.astype(cdt), wproj_ref[lo:hi, :],
                          preferred_element_type=jnp.float32)                 # (N, C)
        y = contrib if y is None else y + contrib

    o_ref[0] = (y + bproj_ref[...]).astype(o_ref.dtype)


def channel_attention_forward(params, x, size, *, groups, use_bf16=True):
    """Pallas forward of ChannelAttention: returns (proj(channel_attn(qkv(x))), size)."""
    B, N, C = x.shape
    assert C % groups == 0, (C, groups)
    cg = C // groups
    pack_groups = _pick_pack_groups(groups, cg)
    pack_w = pack_groups * cg

    wdt = jnp.bfloat16 if use_bf16 else jnp.float32
    # Weight casts happen ONCE here (outside the kernel body), so the resident VMEM copy
    # is already bf16 and no per-grid-step VPU cast is executed.
    wqkv = params["qkv_w"].astype(wdt)                      # (C, 3C)
    wproj = params["proj_w"].astype(wdt)                    # (C, C)
    bqkv = params["qkv_b"].reshape(1, 3 * C).astype(jnp.float32)
    bproj = params["proj_b"].reshape(1, C).astype(jnp.float32)

    # Additive block-diagonal mask: 0 within a group, -1e30 across groups.
    gid = jnp.arange(pack_w, dtype=jnp.int32) // cg
    mask = jnp.where(gid[:, None] == gid[None, :], 0.0, -1e30).astype(jnp.float32)

    itemsize = 2 if use_bf16 else 4
    need = (
        4 * N * C * 4                                        # x + out double buffers (f32)
        + 3 * C * C * itemsize + C * C * itemsize            # resident weights
        + 4 * C * 4 + pack_w * pack_w * 4                    # biases + mask
        + 3 * N * C * 4 + 3 * N * C * itemsize               # qkv f32 + q/k/v
        + 3 * pack_w * pack_w * 4 + 2 * N * pack_w * 4       # s / p / out_p temporaries
        + N * C * 4                                          # y accumulator
        + (8 << 20)                                          # headroom
    )

    out = pl.pallas_call(
        functools.partial(_fused_channel_attn_kernel, n_tokens=N, use_bf16=use_bf16),
        out_shape=jax.ShapeDtypeStruct((B, N, C), x.dtype),
        grid=(B,),
        in_specs=[
            pl.BlockSpec((1, N, C), lambda b: (b, 0, 0)),        # per-batch x block
            pl.BlockSpec((C, 3 * C), lambda b: (0, 0)),          # qkv weight (resident)
            pl.BlockSpec((1, 3 * C), lambda b: (0, 0)),          # qkv bias (resident)
            pl.BlockSpec((C, C), lambda b: (0, 0)),              # proj weight (resident)
            pl.BlockSpec((1, C), lambda b: (0, 0)),              # proj bias (resident)
            pl.BlockSpec((pack_w, pack_w), lambda b: (0, 0)),    # block-diag mask (resident)
        ],
        out_specs=pl.BlockSpec((1, N, C), lambda b: (b, 0, 0)),
        compiler_params=pltpu.CompilerParams(
            dimension_semantics=("parallel",),
            vmem_limit_bytes=_vmem_limit_bytes(need),
        ),
    )(x, wqkv, bqkv, wproj, bproj, mask)
    return out, size


# --------------------------------------------------------------------------------------
# Plain-JAX reference (mirrors the PyTorch module line by line) for validation.
# --------------------------------------------------------------------------------------
def channel_attention_reference(params, x, size, *, groups):
    B, N, C = x.shape
    cg = C // groups
    hp = jax.lax.Precision.HIGHEST
    qkv = jnp.einsum("bnc,cd->bnd", x, params["qkv_w"], precision=hp) + params["qkv_b"]
    qkv = qkv.reshape(B, N, 3, groups, cg).transpose(2, 0, 3, 1, 4)   # (3, B, g, N, cg)
    q, k, v = qkv[0], qkv[1], qkv[2]
    q = q * float(N) ** -0.5
    attn = jnp.einsum("bgnc,bgnd->bgcd", q, k, precision=hp)          # q^T @ k
    attn = jax.nn.softmax(attn, axis=-1)
    out = jnp.einsum("bgcd,bgnd->bgnc", attn, v, precision=hp)        # (attn @ v^T)^T
    out = out.transpose(0, 2, 1, 3).reshape(B, N, C)
    out = jnp.einsum("bnc,cd->bnd", out, params["proj_w"], precision=hp) + params["proj_b"]
    return out, size


# --------------------------------------------------------------------------------------
if __name__ == "__main__":
    key = jax.random.PRNGKey(0)
    k1, k2, k3, k4, k5 = jax.random.split(key, 5)

    # Small but lane-dense shapes: C and 3C are multiples of 128.
    B, H, W, C, groups = 2, 16, 16, 128, 8
    N = H * W

    # Weights stored as (in, out) = torch_linear.weight.T ; biases enabled (qkv_bias=True).
    params = dict(
        qkv_w=jax.random.normal(k1, (C, 3 * C), jnp.float32) * 0.05,
        qkv_b=jax.random.normal(k2, (3 * C,), jnp.float32) * 0.05,
        proj_w=jax.random.normal(k3, (C, C), jnp.float32) * 0.05,
        proj_b=jax.random.normal(k4, (C,), jnp.float32) * 0.05,
    )
    x = jax.random.normal(k5, (B, N, C), jnp.float32)

    run = jax.jit(lambda p, xx: channel_attention_forward(
        p, xx, (H, W), groups=groups, use_bf16=True)[0])
    out = jax.block_until_ready(run(params, x))

    assert out.shape == (B, N, C), out.shape
    assert bool(jnp.all(jnp.isfinite(out)))

    ref, ref_size = channel_attention_reference(params, x, (H, W), groups=groups)
    assert ref_size == (H, W)
    max_err = float(jnp.max(jnp.abs(out - ref)))
    # bf16 MXU operands -> small numeric drift vs the f32 reference.
    assert max_err < 2.5e-2, f"max abs err {max_err}"

    print("KERNEL_OK")
</pallas_src>

<mosaic_0001>
module attributes {stable_mosaic.version = 11 : i64} {
  func.func @_fused_channel_attn_kernel(%arg0: i32, %arg1: memref<1x256x128xf32, #tpu.memory_space<vmem>>, %arg2: memref<128x384xbf16, #tpu.memory_space<vmem>>, %arg3: memref<1x384xf32, #tpu.memory_space<vmem>>, %arg4: memref<128x128xbf16, #tpu.memory_space<vmem>>, %arg5: memref<1x128xf32, #tpu.memory_space<vmem>>, %arg6: memref<128x128xf32, #tpu.memory_space<vmem>>, %arg7: memref<1x256x128xf32, #tpu.memory_space<vmem>>) attributes {dimension_semantics = [#tpu.dimension_semantics<parallel>], iteration_bounds = array<i64: 2>, scalar_prefetch = 0 : i64, scratch_operands = 0 : i64, tpu.core_type = #tpu.core_type<tc>, window_params = [{transform_indices = @transform_0, window_bounds = array<i64: 1, 256, 128>}, {pipeline_mode = #tpu.pipeline_mode<synchronous>, transform_indices = @transform_1, window_bounds = array<i64: 128, 384>}, {pipeline_mode = #tpu.pipeline_mode<synchronous>, transform_indices = @transform_2, window_bounds = array<i64: 1, 384>}, {pipeline_mode = #tpu.pipeline_mode<synchronous>, transform_indices = @transform_3, window_bounds = array<i64: 128, 128>}, {pipeline_mode = #tpu.pipeline_mode<synchronous>, transform_indices = @transform_4, window_bounds = array<i64: 1, 128>}, {pipeline_mode = #tpu.pipeline_mode<synchronous>, transform_indices = @transform_5, window_bounds = array<i64: 128, 128>}, {transform_indices = @transform_6, window_bounds = array<i64: 1, 256, 128>}]} {
    %c0 = arith.constant 0 : index
    %c0_0 = arith.constant 0 : index
    %c0_1 = arith.constant 0 : index
    %0 = vector.load %arg1[%c0, %c0_0, %c0_1] : memref<1x256x128xf32, #tpu.memory_space<vmem>>, vector<1x256x128xf32>
    %1 = vector.shape_cast %0 : vector<1x256x128xf32> to vector<256x128xf32>
    %2 = arith.truncf %1 : vector<256x128xf32> to vector<256x128xbf16>
    %c0_2 = arith.constant 0 : index
    %c0_3 = arith.constant 0 : index
    %3 = vector.load %arg2[%c0_2, %c0_3] : memref<128x384xbf16, #tpu.memory_space<vmem>>, vector<128x384xbf16>
    %cst = arith.constant dense<0.000000e+00> : vector<256x384xf32>
    %4 = tpu.matmul %2, %3, %cst {dimension_numbers = #tpu.dot_dimension_numbers<[1], [0], [0], [1], [0, 0, 1, 1], [], []>} : vector<256x128xbf16>, vector<128x384xbf16>, vector<256x384xf32> -> vector<256x384xf32>
    %c0_4 = arith.constant 0 : index
    %c0_5 = arith.constant 0 : index
    %5 = vector.load %arg3[%c0_4, %c0_5] : memref<1x384xf32, #tpu.memory_space<vmem>>, vector<1x384xf32>
    %6 = vector.broadcast %5 : vector<1x384xf32> to vector<256x384xf32>
    %7 = arith.addf %4, %6 : vector<256x384xf32>
    %8 = vector.extract_strided_slice %7 {offsets = [0, 0], sizes = [256, 128], strides = [1, 1]} : vector<256x384xf32> to vector<256x128xf32>
    %9 = arith.truncf %8 : vector<256x128xf32> to vector<256x128xbf16>
    %10 = vector.extract_strided_slice %7 {offsets = [0, 128], sizes = [256, 128], strides = [1, 1]} : vector<256x384xf32> to vector<256x128xf32>
    %11 = arith.truncf %10 : vector<256x128xf32> to vector<256x128xbf16>
    %12 = vector.extract_strided_slice %7 {offsets = [0, 256], sizes = [256, 128], strides = [1, 1]} : vector<256x384xf32> to vector<256x128xf32>
    %13 = arith.truncf %12 : vector<256x128xf32> to vector<256x128xbf16>
    %c0_6 = arith.constant 0 : index
    %c0_7 = arith.constant 0 : index
    %14 = vector.load %arg6[%c0_6, %c0_7] : memref<128x128xf32, #tpu.memory_space<vmem>>, vector<128x128xf32>
    %cst_8 = arith.constant dense<0.000000e+00> : vector<128x128xf32>
    %15 = tpu.matmul %9, %11, %cst_8 {dimension_numbers = #tpu.dot_dimension_numbers<[0], [0], [1], [1], [0, 1, 1, 1], [], []>} : vector<256x128xbf16>, vector<256x128xbf16>, vector<128x128xf32> -> vector<128x128xf32>
    %cst_9 = arith.constant 6.250000e-02 : f32
    %16 = vector.broadcast %cst_9 : f32 to vector<128x128xf32>
    %17 = arith.mulf %15, %16 : vector<128x128xf32>
    %18 = arith.addf %17, %14 : vector<128x128xf32>
    %cst_10 = arith.constant dense<0xFF800000> : vector<128xf32>
    %19 = vector.multi_reduction <maximumf>, %18, %cst_10 [1] : vector<128x128xf32> to vector<128xf32>
    %20 = vector.shape_cast %19 : vector<128xf32> to vector<128x1xf32>
    %21 = vector.broadcast %20 : vector<128x1xf32> to vector<128x128xf32>
    %22 = arith.subf %18, %21 : vector<128x128xf32>
    %23 = math.exp %22 : vector<128x128xf32>
    %cst_11 = arith.constant dense<0.000000e+00> : vector<128xf32>
    %24 = vector.multi_reduction <add>, %23, %cst_11 [1] : vector<128x128xf32> to vector<128xf32>
    %25 = vector.shape_cast %24 : vector<128xf32> to vector<128x1xf32>
    %26 = tpu.reciprocal %25 : vector<128x1xf32> -> vector<128x1xf32>
    %27 = vector.broadcast %26 : vector<128x1xf32> to vector<128x128xf32>
    %28 = arith.mulf %23, %27 : vector<128x128xf32>
    %29 = arith.truncf %28 : vector<128x128xf32> to vector<128x128xbf16>
    %cst_12 = arith.constant dense<0.000000e+00> : vector<256x128xf32>
    %30 = tpu.matmul %13, %29, %cst_12 {dimension_numbers = #tpu.dot_dimension_numbers<[1], [1], [0], [0], [0, 0, 1, 0], [], []>} : vector<256x128xbf16>, vector<128x128xbf16>, vector<256x128xf32> -> vector<256x128xf32>
    %31 = arith.truncf %30 : vector<256x128xf32> to vector<256x128xbf16>
    %c0_13 = arith.constant 0 : index
    %c0_14 = arith.constant 0 : index
    %32 = vector.load %arg4[%c0_13, %c0_14] : memref<128x128xbf16, #tpu.memory_space<vmem>>, vector<128x128xbf16>
    %cst_15 = arith.constant dense<0.000000e+00> : vector<256x128xf32>
    %33 = tpu.matmul %31, %32, %cst_15 {dimension_numbers = #tpu.dot_dimension_numbers<[1], [0], [0], [1], [0, 0, 1, 1], [], []>} : vector<256x128xbf16>, vector<128x128xbf16>, vector<256x128xf32> -> vector<256x128xf32>
    %c0_16 = arith.constant 0 : index
    %c0_17 = arith.constant 0 : index
    %34 = vector.load %arg5[%c0_16, %c0_17] : memref<1x128xf32, #tpu.memory_space<vmem>>, vector<1x128xf32>
    %35 = vector.broadcast %34 : vector<1x128xf32> to vector<256x128xf32>
    %36 = arith.addf %33, %35 : vector<256x128xf32>
    %c0_18 = arith.constant 0 : index
    %c0_19 = arith.constant 0 : index
    %c0_20 = arith.constant 0 : index
    %37 = vector.load %arg7[%c0_18, %c0_19, %c0_20] : memref<1x256x128xf32, #tpu.memory_space<vmem>>, vector<1x256x128xf32>
    %38 = vector.shape_cast %37 : vector<1x256x128xf32> to vector<256x128xf32>
    %39 = vector.shape_cast %36 : vector<256x128xf32> to vector<1x256x128xf32>
    tpu.vector_store %arg7[%c0_18, %c0_19, %c0_20], %39 {strides = array<i32>} : memref<1x256x128xf32, #tpu.memory_space<vmem>>, vector<1x256x128xf32>,
    return
  }
  func.func @transform_0(%arg0: i32) -> (i32, i32, i32) {
    %c0_i32 = arith.constant 0 : i32
    %c0_i32_0 = arith.constant 0 : i32
    %c0_i32_1 = arith.constant 0 : i32
    return %arg0, %c0_i32, %c0_i32_0 : i32, i32, i32
  }
  func.func @transform_1(%arg0: i32) -> (i32, i32) {
    %c0_i32 = arith.constant 0 : i32
    %c0_i32_0 = arith.constant 0 : i32
    %c0_i32_1 = arith.constant 0 : i32
    return %c0_i32, %c0_i32_0 : i32, i32
  }
  func.func @transform_2(%arg0: i32) -> (i32, i32) {
    %c0_i32 = arith.constant 0 : i32
    %c0_i32_0 = arith.constant 0 : i32
    %c0_i32_1 = arith.constant 0 : i32
    return %c0_i32, %c0_i32_0 : i32, i32
  }
  func.func @transform_3(%arg0: i32) -> (i32, i32) {
    %c0_i32 = arith.constant 0 : i32
    %c0_i32_0 = arith.constant 0 : i32
    %c0_i32_1 = arith.constant 0 : i32
    return %c0_i32, %c0_i32_0 : i32, i32
  }
  func.func @transform_4(%arg0: i32) -> (i32, i32) {
    %c0_i32 = arith.constant 0 : i32
    %c0_i32_0 = arith.constant 0 : i32
    %c0_i32_1 = arith.constant 0 : i32
    return %c0_i32, %c0_i32_0 : i32, i32
  }
  func.func @transform_5(%arg0: i32) -> (i32, i32) {
    %c0_i32 = arith.constant 0 : i32
    %c0_i32_0 = arith.constant 0 : i32
    %c0_i32_1 = arith.constant 0 : i32
    return %c0_i32, %c0_i32_0 : i32, i32
  }
  func.func @transform_6(%arg0: i32) -> (i32, i32, i32) {
    %c0_i32 = arith.constant 0 : i32
    %c0_i32_0 = arith.constant 0 : i32
    %c0_i32_1 = arith.constant 0 : i32
    return %arg0, %c0_i32, %c0_i32_0 : i32, i32, i32
  }
}

</mosaic_0001>

<llo_original>
// kernel: _lambda_.1
$region0: #{_lambda_.1}
  #allocation0 [shape = 'u32[]', space=smem, size = 0x4, offset = 0x4, fixed_abs, tag = 'smem constant byte address 0x4 - core index']
  #allocation1 [shape = 'u32[144,128]{1,0:T(1,128)}', space=vmem, size = 0x12000, scoped, tag = 'internal scratch']
  %s0 = inlined_call_operand.vmem [shape: f32[2,256,128], index: 0, kind: input, shape index: {}]
  %s1 = inlined_call_operand.vmem [shape: bf16[128,384], index: 1, kind: input, shape index: {}]
  %s2 = inlined_call_operand.vmem [shape: f32[1,384], index: 2, kind: input, shape index: {}]
  %s3 = inlined_call_operand.vmem [shape: bf16[128,128], index: 3, kind: input, shape index: {}]
  %s4 = inlined_call_operand.vmem [shape: f32[1,128], index: 4, kind: input, shape index: {}]
  %s5 = inlined_call_operand.vmem [shape: f32[128,128], index: 5, kind: input, shape index: {}]
  %s6 = inlined_call_operand.hbm [shape: f32[2,256,128], index: 6, kind: output, shape index: {}]
  %s7 = sld [smem:[#allocation0]]
  $region57: #{_lambda_.1} parent=0
    _
  %s9 = ssub.s32 1, %s7
  %s10 = scalar_select 0, %s9, %s7
  $region1: #{_lambda_.1} parent=0
    #allocation2 [shape = 'u8[262144]{0}', space=vmem, size = 0x40000, scoped, tag = 'output window, operand 0']
    #allocation3 [shape = 's32[2]{0}', space=sflag, size = 0x8, scoped, tag = 'scoped memory for _lambda_.1']
    %11 = vsyncpa [#allocation3], 0
    %s12 = scalar_lea.sflag [#allocation3], 1
    %13 = vsyncpa %s12, 0
    loop: start=0, step=1, limit=4
    $region2: #{_lambda_.1} parent=1 // loop_pre_header
      _
    $region3: #{_lambda_.1} parent=1 // loop_header
      %s15 = sphi 0, %s19
      %p16 = scmp.ge.s32.totalorder %s15, 4
      %s25 = sphi 0, %s27
      %s28 = sphi 0, %s25
      %s29 = sphi 0, %s28
      %s45 = sphi 0, %s29
      %s49 = sphi 0, %s49
      %s51 = sphi 0, %s49
      %s52 = sphi 0, %s51
      %s66 = sphi 0, %s52
      %s70 = sphi 0, %s70
      %s72 = sphi 0, %s70
      %s73 = sphi 0, %s72
      %s87 = sphi 0, %s73
      %s91 = sphi 0, %s91
      %s93 = sphi 0, %s91
      %s94 = sphi 0, %s93
      %s108 = sphi 0, %s94
      %s112 = sphi 0, %s112
      %s114 = sphi 0, %s112
      %s115 = sphi 0, %s114
      %s129 = sphi 0, %s115
      %s133 = sphi 0, %s133
      %s135 = sphi 0, %s133
      %s136 = sphi 0, %s135
      %s150 = sphi 0, %s136
      %s156 = sphi 0, %s158
      %s159 = sphi 0, %s156
      %s160 = sphi 0, %s159
      %s176 = sphi 0, %s160
    $region4: #{_lambda_.1} parent=1 // loop_header_branch
      %18 = sbr.rel (%p16) target = $region8
    $region5: #{_lambda_.1} parent=1 // loop_body
      %s20 = ssub.s32 %s15, 1
      %s21 = ssub.s32 %s15, 2
      %s22 = sadd.s32 %s15, 1
      %s23 = ssub.s32 %s15, %s22
      %p24 = scmp.eq.s32.totalorder %s23, 0
      %s26 = sadd.s32 %s25, 1
      %s27 = scalar_select %p24, %s25, %s26
      %p30 = pneg %p24
      %p31 = scmp.eq.s32.totalorder %s15, 1
      %p32 = por %p30, %p31
      %p33 = scmp.ne.s32.totalorder %s25, %s28
      %p34 = scmp.eq.s32.totalorder %s15, 0
      %p35 = por %p33, %p34
      %p36 = scmp.ne.s32.totalorder %s25, %s28
      %p37 = scmp.eq.s32.totalorder %s20, 1
      %p38 = por %p36, %p37
      %p39 = scmp.ne.s32.totalorder %s28, %s29
      %p40 = scmp.eq.s32.totalorder %s20, 0
      %p41 = por %p39, %p40
      %p42 = scmp.ne.s32.totalorder %s28, %s29
      %p43 = scmp.eq.s32.totalorder %s21, 1
      %p44 = por %p42, %p43
      %p46 = scmp.ne.s32.totalorder %s29, %s45
      %p47 = scmp.eq.s32.totalorder %s21, 0
      %p48 = por %p46, %p47
      %s50 = sadd.s32 %s49, 1
      %p53 = scmp.eq.s32.totalorder %s15, 1
      %p54 = scmp.ne.s32.totalorder %s49, %s51
      %p55 = scmp.eq.s32.totalorder %s15, 0
      %p56 = por %p54, %p55
      %p57 = scmp.ne.s32.totalorder %s49, %s51
      %p58 = scmp.eq.s32.totalorder %s20, 1
      %p59 = por %p57, %p58
      %p60 = scmp.ne.s32.totalorder %s51, %s52
      %p61 = scmp.eq.s32.totalorder %s20, 0
      %p62 = por %p60, %p61
      %p63 = scmp.ne.s32.totalorder %s51, %s52
      %p64 = scmp.eq.s32.totalorder %s21, 1
      %p65 = por %p63, %p64
      %p67 = scmp.ne.s32.totalorder %s52, %s66
      %p68 = scmp.eq.s32.totalorder %s21, 0
      %p69 = por %p67, %p68
      %s71 = sadd.s32 %s70, 1
      %p74 = scmp.eq.s32.totalorder %s15, 1
      %p75 = scmp.ne.s32.totalorder %s70, %s72
      %p76 = scmp.eq.s32.totalorder %s15, 0
      %p77 = por %p75, %p76
      %p78 = scmp.ne.s32.totalorder %s70, %s72
      %p79 = scmp.eq.s32.totalorder %s20, 1
      %p80 = por %p78, %p79
      %p81 = scmp.ne.s32.totalorder %s72, %s73
      %p82 = scmp.eq.s32.totalorder %s20, 0
      %p83 = por %p81, %p82
      %p84 = scmp.ne.s32.totalorder %s72, %s73
      %p85 = scmp.eq.s32.totalorder %s21, 1
      %p86 = por %p84, %p85
      %p88 = scmp.ne.s32.totalorder %s73, %s87
      %p89 = scmp.eq.s32.totalorder %s21, 0
      %p90 = por %p88, %p89
      %s92 = sadd.s32 %s91, 1
      %p95 = scmp.eq.s32.totalorder %s15, 1
      %p96 = scmp.ne.s32.totalorder %s91, %s93
      %p97 = scmp.eq.s32.totalorder %s15, 0
      %p98 = por %p96, %p97
      %p99 = scmp.ne.s32.totalorder %s91, %s93
      %p100 = scmp.eq.s32.totalorder %s20, 1
      %p101 = por %p99, %p100
      %p102 = scmp.ne.s32.totalorder %s93, %s94
      %p103 = scmp.eq.s32.totalorder %s20, 0
      %p104 = por %p102, %p103
      %p105 = scmp.ne.s32.totalorder %s93, %s94
      %p106 = scmp.eq.s32.totalorder %s21, 1
      %p107 = por %p105, %p106
      %p109 = scmp.ne.s32.totalorder %s94, %s108
      %p110 = scmp.eq.s32.totalorder %s21, 0
      %p111 = por %p109, %p110
      %s113 = sadd.s32 %s112, 1
      %p116 = scmp.eq.s32.totalorder %s15, 1
      %p117 = scmp.ne.s32.totalorder %s112, %s114
      %p118 = scmp.eq.s32.totalorder %s15, 0
      %p119 = por %p117, %p118
      %p120 = scmp.ne.s32.totalorder %s112, %s114
      %p121 = scmp.eq.s32.totalorder %s20, 1
      %p122 = por %p120, %p121
      %p123 = scmp.ne.s32.totalorder %s114, %s115
      %p124 = scmp.eq.s32.totalorder %s20, 0
      %p125 = por %p123, %p124
      %p126 = scmp.ne.s32.totalorder %s114, %s115
      %p127 = scmp.eq.s32.totalorder %s21, 1
      %p128 = por %p126, %p127
      %p130 = scmp.ne.s32.totalorder %s115, %s129
      %p131 = scmp.eq.s32.totalorder %s21, 0
      %p132 = por %p130, %p131
      %s134 = sadd.s32 %s133, 1
      %p137 = scmp.eq.s32.totalorder %s15, 1
      %p138 = scmp.ne.s32.totalorder %s133, %s135
      %p139 = scmp.eq.s32.totalorder %s15, 0
      %p140 = por %p138, %p139
      %p141 = scmp.ne.s32.totalorder %s133, %s135
      %p142 = scmp.eq.s32.totalorder %s20, 1
      %p143 = por %p141, %p142
      %p144 = scmp.ne.s32.totalorder %s135, %s136
      %p145 = scmp.eq.s32.totalorder %s20, 0
      %p146 = por %p144, %p145
      %p147 = scmp.ne.s32.totalorder %s135, %s136
      %p148 = scmp.eq.s32.totalorder %s21, 1
      %p149 = por %p147, %p148
      %p151 = scmp.ne.s32.totalorder %s136, %s150
      %p152 = scmp.eq.s32.totalorder %s21, 0
      %p153 = por %p151, %p152
      %s154 = ssub.s32 %s15, %s22
      %p155 = scmp.eq.s32.totalorder %s154, 0
      %s157 = sadd.s32 %s156, 1
      %s158 = scalar_select %p155, %s156, %s157
      %p161 = pneg %p155
      %p162 = scmp.eq.s32.totalorder %s15, 1
      %p163 = por %p161, %p162
      %p164 = scmp.ne.s32.totalorder %s156, %s159
      %p165 = scmp.eq.s32.totalorder %s15, 0
      %p166 = por %p164, %p165
      %p167 = scmp.ne.s32.totalorder %s156, %s159
      %p168 = scmp.eq.s32.totalorder %s20, 1
      %p169 = por %p167, %p168
      %p170 = scmp.ne.s32.totalorder %s159, %s160
      %p171 = scmp.eq.s32.totalorder %s20, 0
      %p172 = por %p170, %p171
      %p173 = scmp.ne.s32.totalorder %s159, %s160
      %p174 = scmp.eq.s32.totalorder %s21, 1
      %p175 = por %p173, %p174
      %p177 = scmp.ne.s32.totalorder %s160, %s176
      %p178 = scmp.eq.s32.totalorder %s21, 0
      %p179 = por %p177, %p178
      %p180 = scmp.le.s32.totalorder 1, %s15
      %p181 = scmp.lt.s32.totalorder %s15, 3
      %p182 = pnand %p180, %p181
      %p183 = pneg %p182
      // Predicated region
      $region9: #{_lambda_.1} parent=5 // pred_check
        _
      $region10: #{_lambda_.1} parent=5 // pred_check_branch
        %185 = sbr.rel (%p182) target = $region12
      $region11: #{_lambda_.1} parent=5 // pred_region
        %s186 = ssub.s32 %s15, 1
        // Predicated region
        $region13: #{_lambda_.1} parent=11 // pred_check
          %p187 = pneg %p62
        $region14: #{_lambda_.1} parent=11 // pred_check_branch
          %189 = sbr.rel (%p187) target = $region16
        $region15: #{_lambda_.1} parent=11 // pred_region
          _
        $region16: #{_lambda_.1} parent=11 // pred_fallthru
          _
        // Predicated region
        $region17: #{_lambda_.1} parent=11 // pred_check
          %p190 = pneg %p83
        $region18: #{_lambda_.1} parent=11 // pred_check_branch
          %192 = sbr.rel (%p190) target = $region20
        $region19: #{_lambda_.1} parent=11 // pred_region
          _
        $region20: #{_lambda_.1} parent=11 // pred_fallthru
          _
        // Predicated region
        $region21: #{_lambda_.1} parent=11 // pred_check
          %p193 = pneg %p104
        $region22: #{_lambda_.1} parent=11 // pred_check_branch
          %195 = sbr.rel (%p193) target = $region24
        $region23: #{_lambda_.1} parent=11 // pred_region
          _
        $region24: #{_lambda_.1} parent=11 // pred_fallthru
          _
        // Predicated region
        $region25: #{_lambda_.1} parent=11 // pred_check
          %p196 = pneg %p125
        $region26: #{_lambda_.1} parent=11 // pred_check_branch
          %198 = sbr.rel (%p196) target = $region28
        $region27: #{_lambda_.1} parent=11 // pred_region
          _
        $region28: #{_lambda_.1} parent=11 // pred_fallthru
          _
        // Predicated region
        $region29: #{_lambda_.1} parent=11 // pred_check
          %p199 = pneg %p146
        $region30: #{_lambda_.1} parent=11 // pred_check_branch
          %201 = sbr.rel (%p199) target = $region32
        $region31: #{_lambda_.1} parent=11 // pred_region
          _
        $region32: #{_lambda_.1} parent=11 // pred_fallthru
          _
      $region12: #{_lambda_.1} parent=5 // pred_fallthru
        _
      %p202 = scmp.lt.s32.totalorder %s15, 2
      // Predicated region
      $region33: #{_lambda_.1} parent=5 // pred_check
        %p203 = pneg %p202
      $region34: #{_lambda_.1} parent=5 // pred_check_branch
        %205 = sbr.rel (%p203) target = $region36
      $region35: #{_lambda_.1} parent=5 // pred_region
        // Predicated region
        $region37: #{_lambda_.1} parent=35 // pred_check
          %p206 = pneg %p35
        $region38: #{_lambda_.1} parent=35 // pred_check_branch
          %208 = sbr.rel (%p206) target = $region40
        $region39: #{_lambda_.1} parent=35 // pred_region
          %p209 = scmp.lt.s32.totalorder %s15, 1
          %s210 = scalar_select %p209, %s15, 1
          %s211 = smul.addr %s210, 32
          %s212 = smul.addr %s211, 8
          %s213 = scalar_lea.vmem %s0, %s212
        $region40: #{_lambda_.1} parent=35 // pred_fallthru
          _
      $region36: #{_lambda_.1} parent=5 // pred_fallthru
        _
      %p214 = scmp.le.s32.totalorder 1, %s15
      %p215 = scmp.lt.s32.totalorder %s15, 3
      %p216 = pnand %p214, %p215
      %p217 = pneg %p216
      // Predicated region
      $region41: #{_lambda_.1} parent=5 // pred_check
        _
      $region42: #{_lambda_.1} parent=5 // pred_check_branch
        %219 = sbr.rel (%p216) target = $region44
      $region43: #{_lambda_.1} parent=5 // pred_region
        %s220 = ssub.s32 %s15, 1
        %p221 = scmp.lt.s32.totalorder %s20, 1
        %s222 = scalar_select %p221, %s20, 1
        %s223 = smul.addr %s222, 32
        %s224 = smul.addr %s223, 8
        %s225 = scalar_lea.vmem %s0, %s224
        %p226 = pneg %p41
        %p227 = pneg %p38
        %p228 = pneg %p62
        %p229 = pneg %p59
        %p230 = pneg %p83
        %p231 = pneg %p80
        %p232 = pneg %p104
        %p233 = pneg %p101
        %p234 = pneg %p125
        %p235 = pneg %p122
        %p236 = pneg %p146
        %p237 = pneg %p143
        %p238 = pneg %p172
        %p239 = pneg %p169
        %s240 = sand.u32 %s159, 1
        %s241 = scalar_lea.sflag [#allocation3], %s240
        %s242 = sand.u32 %s159, 1
        %s243 = smul.addr %s242, 256
        %s244 = scalar_lea.vmem [#allocation2], %s243
        %p245 = scmp.lt.s32.totalorder %s20, 1
        %s246 = scalar_select %p245, %s20, 1
        %s247 = smul.addr %s246, 32
        %s248 = smul.addr %s247, 8
        %s249 = scalar_lea.vmem %s0, %s248
        %v251 = vld [vmem:[%s249] sm:$0xff]
        %v252 = vld [vmem:[%s249 + $0x8] sm:$0xff]
        %v253 = vld [vmem:[%s249 + $0x10] sm:$0xff]
        %v254 = vld [vmem:[%s249 + $0x18] sm:$0xff]
        %v255 = vld [vmem:[%s249 + $0x20] sm:$0xff]
        %v256 = vld [vmem:[%s249 + $0x28] sm:$0xff]
        %v257 = vld [vmem:[%s249 + $0x30] sm:$0xff]
        %v258 = vld [vmem:[%s249 + $0x38] sm:$0xff]
        %v259 = vld [vmem:[%s249 + $0x40] sm:$0xff]
        %v260 = vld [vmem:[%s249 + $0x48] sm:$0xff]
        %v261 = vld [vmem:[%s249 + $0x50] sm:$0xff]
        %v262 = vld [vmem:[%s249 + $0x58] sm:$0xff]
        %v263 = vld [vmem:[%s249 + $0x60] sm:$0xff]
        %v264 = vld [vmem:[%s249 + $0x68] sm:$0xff]
        %v265 = vld [vmem:[%s249 + $0x70] sm:$0xff]
        %v266 = vld [vmem:[%s249 + $0x78] sm:$0xff]
        %v267 = vld [vmem:[%s249 + $0x80] sm:$0xff]
        %v268 = vld [vmem:[%s249 + $0x88] sm:$0xff]
        %v269 = vld [vmem:[%s249 + $0x90] sm:$0xff]
        %v270 = vld [vmem:[%s249 + $0x98] sm:$0xff]
        %v271 = vld [vmem:[%s249 + $0xa0] sm:$0xff]
        %v272 = vld [vmem:[%s249 + $0xa8] sm:$0xff]
        %v273 = vld [vmem:[%s249 + $0xb0] sm:$0xff]
        %v274 = vld [vmem:[%s249 + $0xb8] sm:$0xff]
        %v275 = vld [vmem:[%s249 + $0xc0] sm:$0xff]
        %v276 = vld [vmem:[%s249 + $0xc8] sm:$0xff]
        %v277 = vld [vmem:[%s249 + $0xd0] sm:$0xff]
        %v278 = vld [vmem:[%s249 + $0xd8] sm:$0xff]
        %v279 = vld [vmem:[%s249 + $0xe0] sm:$0xff]
        %v280 = vld [vmem:[%s249 + $0xe8] sm:$0xff]
        %v281 = vld [vmem:[%s249 + $0xf0] sm:$0xff]
        %v282 = vld [vmem:[%s249 + $0xf8] sm:$0xff]
        %v283 = vpack.c.bf16 %v252, %v251
        %v284 = vpack.c.bf16 %v254, %v253
        %v285 = vpack.c.bf16 %v256, %v255
        %v286 = vpack.c.bf16 %v258, %v257
        %v287 = vpack.c.bf16 %v260, %v259
        %v288 = vpack.c.bf16 %v262, %v261
        %v289 = vpack.c.bf16 %v264, %v263
        %v290 = vpack.c.bf16 %v266, %v265
        %v291 = vpack.c.bf16 %v268, %v267
        %v292 = vpack.c.bf16 %v270, %v269
        %v293 = vpack.c.bf16 %v272, %v271
        %v294 = vpack.c.bf16 %v274, %v273
        %v295 = vpack.c.bf16 %v276, %v275
        %v296 = vpack.c.bf16 %v278, %v277
        %v297 = vpack.c.bf16 %v280, %v279
        %v298 = vpack.c.bf16 %v282, %v281
        %v299 = vld [vmem:[%s1] sm:$0xff]
        %v300 = vld [vmem:[%s1 + $0x8] sm:$0xf]
        %v301 = vld [vmem:[%s1 + $0xc] sm:$0xff]
        %v302 = vld [vmem:[%s1 + $0x14] sm:$0xf]
        %v303 = vld [vmem:[%s1 + $0x18] sm:$0xff]
        %v304 = vld [vmem:[%s1 + $0x20] sm:$0xf]
        %v305 = vld [vmem:[%s1 + $0x24] sm:$0xff]
        %v306 = vld [vmem:[%s1 + $0x2c] sm:$0xf]
        %v307 = vld [vmem:[%s1 + $0x30] sm:$0xff]
        %v308 = vld [vmem:[%s1 + $0x38] sm:$0xf]
        %v309 = vld [vmem:[%s1 + $0x3c] sm:$0xff]
        %v310 = vld [vmem:[%s1 + $0x44] sm:$0xf]
        %v311 = vld [vmem:[%s1 + $0x48] sm:$0xff]
        %v312 = vld [vmem:[%s1 + $0x50] sm:$0xf]
        %v313 = vld [vmem:[%s1 + $0x54] sm:$0xff]
        %v314 = vld [vmem:[%s1 + $0x5c] sm:$0xf]
        %v315 = vld [vmem:[%s1 + $0x60] sm:$0xff]
        %v316 = vld [vmem:[%s1 + $0x68] sm:$0xf]
        %v317 = vld [vmem:[%s1 + $0x6c] sm:$0xff]
        %v318 = vld [vmem:[%s1 + $0x74] sm:$0xf]
        %v319 = vld [vmem:[%s1 + $0x78] sm:$0xff]
        %v320 = vld [vmem:[%s1 + $0x80] sm:$0xf]
        %v321 = vld [vmem:[%s1 + $0x84] sm:$0xff]
        %v322 = vld [vmem:[%s1 + $0x8c] sm:$0xf]
        %v323 = vld [vmem:[%s1 + $0x90] sm:$0xff]
        %v324 = vld [vmem:[%s1 + $0x98] sm:$0xf]
        %v325 = vld [vmem:[%s1 + $0x9c] sm:$0xff]
        %v326 = vld [vmem:[%s1 + $0xa4] sm:$0xf]
        %v327 = vld [vmem:[%s1 + $0xa8] sm:$0xff]
        %v328 = vld [vmem:[%s1 + $0xb0] sm:$0xf]
        %v329 = vld [vmem:[%s1 + $0xb4] sm:$0xff]
        %v330 = vld [vmem:[%s1 + $0xbc] sm:$0xf]
        %v331 = vld [vmem:[%s2] sm:$0x7]
        %v333 = vlaneseq
        %v334 = vshrl.u32 %v333, 7
        %v335 = vsub.s32 0, %v334
        %v336 = vrot.slane %v331, %v335
        %v337 = vlaneseq
        %v338 = vshrl.u32 %v337, 7
        %v339 = vsub.s32 1, %v338
        %v340 = vrot.slane %v331, %v339
        %v341 = vlaneseq
        %v342 = vshrl.u32 %v341, 7
        %v343 = vsub.s32 2, %v342
        %v344 = vrot.slane %v331, %v343
        %v380 = vunpack.c.l.b16 %v299
        %v381 = vunpack.c.h.b16 %v299
        %v382 = vunpack.c.l.b16 %v300
        %v383 = vunpack.c.l.b16 %v301
        %v384 = vunpack.c.h.b16 %v301
        %v385 = vunpack.c.l.b16 %v302
        %v386 = vunpack.c.l.b16 %v303
        %v387 = vunpack.c.h.b16 %v303
        %v388 = vunpack.c.l.b16 %v304
        %v389 = vunpack.c.l.b16 %v305
        %v390 = vunpack.c.h.b16 %v305
        %v391 = vunpack.c.l.b16 %v306
        %v392 = vunpack.c.l.b16 %v307
        %v393 = vunpack.c.h.b16 %v307
        %v394 = vunpack.c.l.b16 %v308
        %v395 = vunpack.c.l.b16 %v309
        %v396 = vunpack.c.h.b16 %v309
        %v397 = vunpack.c.l.b16 %v310
        %v398 = vunpack.c.l.b16 %v311
        %v399 = vunpack.c.h.b16 %v311
        %v400 = vunpack.c.l.b16 %v312
        %v401 = vunpack.c.l.b16 %v313
        %v402 = vunpack.c.h.b16 %v313
        %v403 = vunpack.c.l.b16 %v314
        %v404 = vunpack.c.l.b16 %v315
        %v405 = vunpack.c.h.b16 %v315
        %v406 = vunpack.c.l.b16 %v316
        %v407 = vunpack.c.l.b16 %v317
        %v408 = vunpack.c.h.b16 %v317
        %v409 = vunpack.c.l.b16 %v318
        %v410 = vunpack.c.l.b16 %v319
        %v411 = vunpack.c.h.b16 %v319
        %v412 = vunpack.c.l.b16 %v320
        %v413 = vunpack.c.l.b16 %v321
        %v414 = vunpack.c.h.b16 %v321
        %v415 = vunpack.c.l.b16 %v322
        %v416 = vunpack.c.l.b16 %v323
        %v417 = vunpack.c.h.b16 %v323
        %v418 = vunpack.c.l.b16 %v324
        %v419 = vunpack.c.l.b16 %v325
        %v420 = vunpack.c.h.b16 %v325
        %v421 = vunpack.c.l.b16 %v326
        %v422 = vunpack.c.l.b16 %v327
        %v423 = vunpack.c.h.b16 %v327
        %v424 = vunpack.c.l.b16 %v328
        %v425 = vunpack.c.l.b16 %v329
        %v426 = vunpack.c.h.b16 %v329
        %v427 = vunpack.c.l.b16 %v330
        %v428 = vpack.c.b16 %v383, %v380
        %v429 = vpack.c.b16 %v384, %v381
        %v430 = vpack.c.b16 %v385, %v382
        %v431 = vpack.c.b16 %v389, %v386
        %v432 = vpack.c.b16 %v390, %v387
        %v433 = vpack.c.b16 %v391, %v388
        %v434 = vpack.c.b16 %v395, %v392
        %v435 = vpack.c.b16 %v396, %v393
        %v436 = vpack.c.b16 %v397, %v394
        %v437 = vpack.c.b16 %v401, %v398
        %v438 = vpack.c.b16 %v402, %v399
        %v439 = vpack.c.b16 %v403, %v400
        %v440 = vpack.c.b16 %v407, %v404
        %v441 = vpack.c.b16 %v408, %v405
        %v442 = vpack.c.b16 %v409, %v406
        %v443 = vpack.c.b16 %v413, %v410
        %v444 = vpack.c.b16 %v414, %v411
        %v445 = vpack.c.b16 %v415, %v412
        %v446 = vpack.c.b16 %v419, %v416
        %v447 = vpack.c.b16 %v420, %v417
        %v448 = vpack.c.b16 %v421, %v418
        %v449 = vpack.c.b16 %v425, %v422
        %v450 = vpack.c.b16 %v426, %v423
        %v451 = vpack.c.b16 %v427, %v424
        %476 = vmatprep.subr.bf16.mxu0 %v450
        %477 = vmatpush1.bf16.msra.mxu0 %v449
        %478 = vmatprep.subr.bf16.mxu0 %v447
        %479 = vmatpush1.bf16.msra.mxu0 %v446
        %480 = vmatprep.subr.bf16.mxu0 %v444
        %481 = vmatpush1.bf16.msra.mxu0 %v443
        %482 = vmatprep.subr.bf16.mxu0 %v441
        %483 = vmatpush1.bf16.msra.mxu0 %v440
        %484 = vmatprep.subr.bf16.mxu0 %v438
        %485 = vmatpush1.bf16.msra.mxu0 %v437
        %486 = vmatprep.subr.bf16.mxu0 %v435
        %487 = vmatpush1.bf16.msra.mxu0 %v434
        %488 = vmatprep.subr.bf16.mxu0 %v432
        %489 = vmatpush1.bf16.msra.mxu0 %v431
        %490 = vmatprep.subr.bf16.mxu0 %v429
        %491 = vmatpush1.bf16.msra.mxu0 %v428
        %492 = vmatprep.subr.bf16.mxu0 0
        %493 = vmatpush2.bf16.msra.mxu0 0
        %494 = vmatprep.subr.bf16.mxu0 0
        %495 = vmatpush2.bf16.msra.mxu0 0
        %496 = vmatprep.subr.bf16.mxu0 0
        %497 = vmatpush2.bf16.msra.mxu0 0
        %498 = vmatprep.subr.bf16.mxu0 0
        %499 = vmatpush2.bf16.msra.mxu0 0
        %500 = vmatprep.subr.bf16.mxu0 0
        %501 = vmatpush2.bf16.msra.mxu0 0
        %502 = vmatprep.subr.bf16.mxu0 0
        %503 = vmatpush2.bf16.msra.mxu0 0
        %504 = vmatprep.subr.bf16.mxu0 0
        %505 = vmatpush2.bf16.msra.mxu0 0
        %506 = vmatprep.subr.bf16.mxu0 0
        %507 = vmatpush2.bf16.msra.mxu0 0
        %508 = vmatprep.mubr.bf16.mxu0 0
        %509 = vmatmul.mubr.bf16.gmra.mxu0 %v283
        %v510 = vpop.f32.mrf.mxu0
        %v511 = vadd.f32 %v336, %v510
        %v512 = vpop.f32.mrf.mxu0
        %v513 = vadd.f32 %v340, %v512
        %v514 = vpop.f32.mrf.mxu0
        %v515 = vadd.f32 %v336, %v514
        %v516 = vpop.f32.mrf.mxu0
        %v517 = vadd.f32 %v340, %v516
        %518 = vmatprep.mubr.bf16.mxu0 0
        %519 = vmatmul.mubr.bf16.gmra.mxu0 %v284
        %v520 = vpop.f32.mrf.mxu0
        %v521 = vadd.f32 %v336, %v520
        %v522 = vpop.f32.mrf.mxu0
        %v523 = vadd.f32 %v340, %v522
        %v524 = vpop.f32.mrf.mxu0
        %v525 = vadd.f32 %v336, %v524
        %v526 = vpop.f32.mrf.mxu0
        %v527 = vadd.f32 %v340, %v526
        %528 = vmatprep.mubr.bf16.mxu0 0
        %529 = vmatmul.mubr.bf16.gmra.mxu0 %v285
        %v530 = vpop.f32.mrf.mxu0
        %v531 = vadd.f32 %v336, %v530
        %v532 = vpop.f32.mrf.mxu0
        %v533 = vadd.f32 %v340, %v532
        %v534 = vpop.f32.mrf.mxu0
        %v535 = vadd.f32 %v336, %v534
        %v536 = vpop.f32.mrf.mxu0
        %v537 = vadd.f32 %v340, %v536
        %538 = vmatprep.mubr.bf16.mxu0 0
        %539 = vmatmul.mubr.bf16.gmra.mxu0 %v286
        %v540 = vpop.f32.mrf.mxu0
        %v541 = vadd.f32 %v336, %v540
        %v542 = vpop.f32.mrf.mxu0
        %v543 = vadd.f32 %v340, %v542
        %v544 = vpop.f32.mrf.mxu0
        %v545 = vadd.f32 %v336, %v544
        %v546 = vpop.f32.mrf.mxu0
        %v547 = vadd.f32 %v340, %v546
        %548 = vmatprep.mubr.bf16.mxu0 0
        %549 = vmatmul.mubr.bf16.gmra.mxu0 %v287
        %v550 = vpop.f32.mrf.mxu0
        %v551 = vadd.f32 %v336, %v550
        %v552 = vpop.f32.mrf.mxu0
        %v553 = vadd.f32 %v340, %v552
        %v554 = vpop.f32.mrf.mxu0
        %v555 = vadd.f32 %v336, %v554
        %v556 = vpop.f32.mrf.mxu0
        %v557 = vadd.f32 %v340, %v556
        %558 = vmatprep.mubr.bf16.mxu0 0
        %559 = vmatmul.mubr.bf16.gmra.mxu0 %v288
        %v560 = vpop.f32.mrf.mxu0
        %v561 = vadd.f32 %v336, %v560
        %v562 = vpop.f32.mrf.mxu0
        %v563 = vadd.f32 %v340, %v562
        %v564 = vpop.f32.mrf.mxu0
        %v565 = vadd.f32 %v336, %v564
        %v566 = vpop.f32.mrf.mxu0
        %v567 = vadd.f32 %v340, %v566
        %568 = vmatprep.mubr.bf16.mxu0 0
        %569 = vmatmul.mubr.bf16.gmra.mxu0 %v289
        %v570 = vpop.f32.mrf.mxu0
        %v571 = vadd.f32 %v336, %v570
        %v572 = vpop.f32.mrf.mxu0
        %v573 = vadd.f32 %v340, %v572
        %v574 = vpop.f32.mrf.mxu0
        %v575 = vadd.f32 %v336, %v574
        %v576 = vpop.f32.mrf.mxu0
        %v577 = vadd.f32 %v340, %v576
        %578 = vmatprep.mubr.bf16.mxu0 0
        %579 = vmatmul.mubr.bf16.gmra.mxu0 %v290
        %v580 = vpop.f32.mrf.mxu0
        %v581 = vadd.f32 %v336, %v580
        %v582 = vpop.f32.mrf.mxu0
        %v583 = vadd.f32 %v340, %v582
        %v584 = vpop.f32.mrf.mxu0
        %v585 = vadd.f32 %v336, %v584
        %v586 = vpop.f32.mrf.mxu0
        %v587 = vadd.f32 %v340, %v586
        %588 = vmatprep.mubr.bf16.mxu0 0
        %589 = vmatmul.mubr.bf16.gmra.mxu0 %v291
        %v590 = vpop.f32.mrf.mxu0
        %v591 = vadd.f32 %v336, %v590
        %v592 = vpop.f32.mrf.mxu0
        %v593 = vadd.f32 %v340, %v592
        %v594 = vpop.f32.mrf.mxu0
        %v595 = vadd.f32 %v336, %v594
        %v596 = vpop.f32.mrf.mxu0
        %v597 = vadd.f32 %v340, %v596
        %598 = vmatprep.mubr.bf16.mxu0 0
        %599 = vmatmul.mubr.bf16.gmra.mxu0 %v292
        %v600 = vpop.f32.mrf.mxu0
        %v601 = vadd.f32 %v336, %v600
        %v602 = vpop.f32.mrf.mxu0
        %v603 = vadd.f32 %v340, %v602
        %v604 = vpop.f32.mrf.mxu0
        %v605 = vadd.f32 %v336, %v604
        %v606 = vpop.f32.mrf.mxu0
        %v607 = vadd.f32 %v340, %v606
        %608 = vmatprep.mubr.bf16.mxu0 0
        %609 = vmatmul.mubr.bf16.gmra.mxu0 %v293
        %v610 = vpop.f32.mrf.mxu0
        %v611 = vadd.f32 %v336, %v610
        %v612 = vpop.f32.mrf.mxu0
        %v613 = vadd.f32 %v340, %v612
        %v614 = vpop.f32.mrf.mxu0
        %v615 = vadd.f32 %v336, %v614
        %v616 = vpop.f32.mrf.mxu0
        %v617 = vadd.f32 %v340, %v616
        %618 = vmatprep.mubr.bf16.mxu0 0
        %619 = vmatmul.mubr.bf16.gmra.mxu0 %v294
        %v620 = vpop.f32.mrf.mxu0
        %v621 = vadd.f32 %v336, %v620
        %v622 = vpop.f32.mrf.mxu0
        %v623 = vadd.f32 %v340, %v622
        %v624 = vpop.f32.mrf.mxu0
        %v625 = vadd.f32 %v336, %v624
        %v626 = vpop.f32.mrf.mxu0
        %v627 = vadd.f32 %v340, %v626
        %628 = vmatprep.mubr.bf16.mxu0 0
        %629 = vmatmul.mubr.bf16.gmra.mxu0 %v295
        %v630 = vpop.f32.mrf.mxu0
        %v631 = vadd.f32 %v336, %v630
        %v632 = vpop.f32.mrf.mxu0
        %v633 = vadd.f32 %v340, %v632
        %v634 = vpop.f32.mrf.mxu0
        %v635 = vadd.f32 %v336, %v634
        %v636 = vpop.f32.mrf.mxu0
        %v637 = vadd.f32 %v340, %v636
        %638 = vmatprep.mubr.bf16.mxu0 0
        %639 = vmatmul.mubr.bf16.gmra.mxu0 %v296
        %v640 = vpop.f32.mrf.mxu0
        %v641 = vadd.f32 %v336, %v640
        %v642 = vpop.f32.mrf.mxu0
        %v643 = vadd.f32 %v340, %v642
        %v644 = vpop.f32.mrf.mxu0
        %v645 = vadd.f32 %v336, %v644
        %v646 = vpop.f32.mrf.mxu0
        %v647 = vadd.f32 %v340, %v646
        %648 = vmatprep.mubr.bf16.mxu0 0
        %649 = vmatmul.mubr.bf16.gmra.mxu0 %v297
        %v650 = vpop.f32.mrf.mxu0
        %v651 = vadd.f32 %v336, %v650
        %v652 = vpop.f32.mrf.mxu0
        %v653 = vadd.f32 %v340, %v652
        %v654 = vpop.f32.mrf.mxu0
        %v655 = vadd.f32 %v336, %v654
        %v656 = vpop.f32.mrf.mxu0
        %v657 = vadd.f32 %v340, %v656
        %658 = vmatprep.mubr.bf16.mxu0 0
        %659 = vmatmul.mubr.bf16.gmra.mxu0 %v298
        %v660 = vpop.f32.mrf.mxu0
        %v661 = vadd.f32 %v336, %v660
        %v662 = vpop.f32.mrf.mxu0
        %v663 = vadd.f32 %v340, %v662
        %v664 = vpop.f32.mrf.mxu0
        %v665 = vadd.f32 %v336, %v664
        %v666 = vpop.f32.mrf.mxu0
        %v667 = vadd.f32 %v340, %v666
        %668 = vdwg.mxu0
        %669 = vmatprep.subr.bf16.mxu0 0
        %670 = vmatpush1.bf16.msra.mxu0 %v451
        %671 = vmatprep.subr.bf16.mxu0 0
        %672 = vmatpush1.bf16.msra.mxu0 %v448
        %673 = vmatprep.subr.bf16.mxu0 0
        %674 = vmatpush1.bf16.msra.mxu0 %v445
        %675 = vmatprep.subr.bf16.mxu0 0
        %676 = vmatpush1.bf16.msra.mxu0 %v442
        %677 = vmatprep.subr.bf16.mxu0 0
        %678 = vmatpush1.bf16.msra.mxu0 %v439
        %679 = vmatprep.subr.bf16.mxu0 0
        %680 = vmatpush1.bf16.msra.mxu0 %v436
        %681 = vmatprep.subr.bf16.mxu0 0
        %682 = vmatpush1.bf16.msra.mxu0 %v433
        %683 = vmatprep.subr.bf16.mxu0 0
        %684 = vmatpush1.bf16.msra.mxu0 %v430
        %685 = vmatprep.subr.bf16.mxu0 0
        %686 = vmatpush2.bf16.msra.mxu0 0
        %687 = vmatprep.subr.bf16.mxu0 0
        %688 = vmatpush2.bf16.msra.mxu0 0
        %689 = vmatprep.subr.bf16.mxu0 0
        %690 = vmatpush2.bf16.msra.mxu0 0
        %691 = vmatprep.subr.bf16.mxu0 0
        %692 = vmatpush2.bf16.msra.mxu0 0
        %693 = vmatprep.subr.bf16.mxu0 0
        %694 = vmatpush2.bf16.msra.mxu0 0
        %695 = vmatprep.subr.bf16.mxu0 0
        %696 = vmatpush2.bf16.msra.mxu0 0
        %697 = vmatprep.subr.bf16.mxu0 0
        %698 = vmatpush2.bf16.msra.mxu0 0
        %699 = vmatprep.subr.bf16.mxu0 0
        %700 = vmatpush2.bf16.msra.mxu0 0
        %701 = vmatprep.mubr.bf16.mxu0 0
        %702 = vmatmul.mubr.bf16.gmra.mxu0 %v283
        %v703 = vpop.f32.mrf.mxu0
        %v704 = vadd.f32 %v344, %v703
        %v705 = vpop.f32.mrf.mxu0
        %v706 = vpop.f32.mrf.mxu0
        %v707 = vadd.f32 %v344, %v706
        %v708 = vpop.f32.mrf.mxu0
        %709 = vmatprep.mubr.bf16.mxu0 0
        %710 = vmatmul.mubr.bf16.gmra.mxu0 %v284
        %v711 = vpop.f32.mrf.mxu0
        %v712 = vadd.f32 %v344, %v711
        %v713 = vpop.f32.mrf.mxu0
        %v714 = vpop.f32.mrf.mxu0
        %v715 = vadd.f32 %v344, %v714
        %v716 = vpop.f32.mrf.mxu0
        %717 = vmatprep.mubr.bf16.mxu0 0
        %718 = vmatmul.mubr.bf16.gmra.mxu0 %v285
        %v719 = vpop.f32.mrf.mxu0
        %v720 = vadd.f32 %v344, %v719
        %v721 = vpop.f32.mrf.mxu0
        %v722 = vpop.f32.mrf.mxu0
        %v723 = vadd.f32 %v344, %v722
        %v724 = vpop.f32.mrf.mxu0
        %725 = vmatprep.mubr.bf16.mxu0 0
        %726 = vmatmul.mubr.bf16.gmra.mxu0 %v286
        %v727 = vpop.f32.mrf.mxu0
        %v728 = vadd.f32 %v344, %v727
        %v729 = vpop.f32.mrf.mxu0
        %v730 = vpop.f32.mrf.mxu0
        %v731 = vadd.f32 %v344, %v730
        %v732 = vpop.f32.mrf.mxu0
        %733 = vmatprep.mubr.bf16.mxu0 0
        %734 = vmatmul.mubr.bf16.gmra.mxu0 %v287
        %v735 = vpop.f32.mrf.mxu0
        %v736 = vadd.f32 %v344, %v735
        %v737 = vpop.f32.mrf.mxu0
        %v738 = vpop.f32.mrf.mxu0
        %v739 = vadd.f32 %v344, %v738
        %v740 = vpop.f32.mrf.mxu0
        %741 = vmatprep.mubr.bf16.mxu0 0
        %742 = vmatmul.mubr.bf16.gmra.mxu0 %v288
        %v743 = vpop.f32.mrf.mxu0
        %v744 = vadd.f32 %v344, %v743
        %v745 = vpop.f32.mrf.mxu0
        %v746 = vpop.f32.mrf.mxu0
        %v747 = vadd.f32 %v344, %v746
        %v748 = vpop.f32.mrf.mxu0
        %749 = vmatprep.mubr.bf16.mxu0 0
        %750 = vmatmul.mubr.bf16.gmra.mxu0 %v289
        %v751 = vpop.f32.mrf.mxu0
        %v752 = vadd.f32 %v344, %v751
        %v753 = vpop.f32.mrf.mxu0
        %v754 = vpop.f32.mrf.mxu0
        %v755 = vadd.f32 %v344, %v754
        %v756 = vpop.f32.mrf.mxu0
        %757 = vmatprep.mubr.bf16.mxu0 0
        %758 = vmatmul.mubr.bf16.gmra.mxu0 %v290
        %v759 = vpop.f32.mrf.mxu0
        %v760 = vadd.f32 %v344, %v759
        %v761 = vpop.f32.mrf.mxu0
        %v762 = vpop.f32.mrf.mxu0
        %v763 = vadd.f32 %v344, %v762
        %v764 = vpop.f32.mrf.mxu0
        %765 = vmatprep.mubr.bf16.mxu0 0
        %766 = vmatmul.mubr.bf16.gmra.mxu0 %v291
        %v767 = vpop.f32.mrf.mxu0
        %v768 = vadd.f32 %v344, %v767
        %v769 = vpop.f32.mrf.mxu0
        %v770 = vpop.f32.mrf.mxu0
        %v771 = vadd.f32 %v344, %v770
        %v772 = vpop.f32.mrf.mxu0
        %773 = vmatprep.mubr.bf16.mxu0 0
        %774 = vmatmul.mubr.bf16.gmra.mxu0 %v292
        %v775 = vpop.f32.mrf.mxu0
        %v776 = vadd.f32 %v344, %v775
        %v777 = vpop.f32.mrf.mxu0
        %v778 = vpop.f32.mrf.mxu0
        %v779 = vadd.f32 %v344, %v778
        %v780 = vpop.f32.mrf.mxu0
        %781 = vmatprep.mubr.bf16.mxu0 0
        %782 = vmatmul.mubr.bf16.gmra.mxu0 %v293
        %v783 = vpop.f32.mrf.mxu0
        %v784 = vadd.f32 %v344, %v783
        %v785 = vpop.f32.mrf.mxu0
        %v786 = vpop.f32.mrf.mxu0
        %v787 = vadd.f32 %v344, %v786
        %v788 = vpop.f32.mrf.mxu0
        %789 = vmatprep.mubr.bf16.mxu0 0
        %790 = vmatmul.mubr.bf16.gmra.mxu0 %v294
        %v791 = vpop.f32.mrf.mxu0
        %v792 = vadd.f32 %v344, %v791
        %v793 = vpop.f32.mrf.mxu0
        %v794 = vpop.f32.mrf.mxu0
        %v795 = vadd.f32 %v344, %v794
        %v796 = vpop.f32.mrf.mxu0
        %797 = vmatprep.mubr.bf16.mxu0 0
        %798 = vmatmul.mubr.bf16.gmra.mxu0 %v295
        %v799 = vpop.f32.mrf.mxu0
        %v800 = vadd.f32 %v344, %v799
        %v801 = vpop.f32.mrf.mxu0
        %v802 = vpop.f32.mrf.mxu0
        %v803 = vadd.f32 %v344, %v802
        %v804 = vpop.f32.mrf.mxu0
        %805 = vmatprep.mubr.bf16.mxu0 0
        %806 = vmatmul.mubr.bf16.gmra.mxu0 %v296
        %v807 = vpop.f32.mrf.mxu0
        %v808 = vadd.f32 %v344, %v807
        %v809 = vpop.f32.mrf.mxu0
        %v810 = vpop.f32.mrf.mxu0
        %v811 = vadd.f32 %v344, %v810
        %v812 = vpop.f32.mrf.mxu0
        %813 = vmatprep.mubr.bf16.mxu0 0
        %814 = vmatmul.mubr.bf16.gmra.mxu0 %v297
        %v815 = vpop.f32.mrf.mxu0
        %v816 = vadd.f32 %v344, %v815
        %v817 = vpop.f32.mrf.mxu0
        %v818 = vpop.f32.mrf.mxu0
        %v819 = vadd.f32 %v344, %v818
        %v820 = vpop.f32.mrf.mxu0
        %821 = vmatprep.mubr.bf16.mxu0 0
        %822 = vmatmul.mubr.bf16.gmra.mxu0 %v298
        %v823 = vpop.f32.mrf.mxu0
        %v824 = vadd.f32 %v344, %v823
        %v825 = vpop.f32.mrf.mxu0
        %v826 = vpop.f32.mrf.mxu0
        %v827 = vadd.f32 %v344, %v826
        %v828 = vpop.f32.mrf.mxu0
        %829 = vdwg.mxu0
        %v830 = vpack.c.bf16 %v515, %v511
        %v831 = vpack.c.bf16 %v525, %v521
        %v832 = vpack.c.bf16 %v535, %v531
        %v833 = vpack.c.bf16 %v545, %v541
        %v834 = vpack.c.bf16 %v555, %v551
        %v835 = vpack.c.bf16 %v565, %v561
        %v836 = vpack.c.bf16 %v575, %v571
        %v837 = vpack.c.bf16 %v585, %v581
        %v838 = vpack.c.bf16 %v595, %v591
        %v839 = vpack.c.bf16 %v605, %v601
        %v840 = vpack.c.bf16 %v615, %v611
        %v841 = vpack.c.bf16 %v625, %v621
        %v842 = vpack.c.bf16 %v635, %v631
        %v843 = vpack.c.bf16 %v645, %v641
        %v844 = vpack.c.bf16 %v655, %v651
        %v845 = vpack.c.bf16 %v665, %v661
        %v846 = vpack.c.bf16 %v517, %v513
        %v847 = vpack.c.bf16 %v527, %v523
        %v848 = vpack.c.bf16 %v537, %v533
        %v849 = vpack.c.bf16 %v547, %v543
        %v850 = vpack.c.bf16 %v557, %v553
        %v851 = vpack.c.bf16 %v567, %v563
        %v852 = vpack.c.bf16 %v577, %v573
        %v853 = vpack.c.bf16 %v587, %v583
        %v854 = vpack.c.bf16 %v597, %v593
        %v855 = vpack.c.bf16 %v607, %v603
        %v856 = vpack.c.bf16 %v617, %v613
        %v857 = vpack.c.bf16 %v627, %v623
        %v858 = vpack.c.bf16 %v637, %v633
        %v859 = vpack.c.bf16 %v647, %v643
        %v860 = vpack.c.bf16 %v657, %v653
        %v861 = vpack.c.bf16 %v667, %v663
        %v862 = vpack.c.bf16 %v707, %v704
        %v863 = vpack.c.bf16 %v715, %v712
        %v864 = vpack.c.bf16 %v723, %v720
        %v865 = vpack.c.bf16 %v731, %v728
        %v866 = vpack.c.bf16 %v739, %v736
        %v867 = vpack.c.bf16 %v747, %v744
        %v868 = vpack.c.bf16 %v755, %v752
        %v869 = vpack.c.bf16 %v763, %v760
        %v870 = vpack.c.bf16 %v771, %v768
        %v871 = vpack.c.bf16 %v779, %v776
        %v872 = vpack.c.bf16 %v787, %v784
        %v873 = vpack.c.bf16 %v795, %v792
        %v874 = vpack.c.bf16 %v803, %v800
        %v875 = vpack.c.bf16 %v811, %v808
        %v876 = vpack.c.bf16 %v819, %v816
        %v877 = vpack.c.bf16 %v827, %v824
        %v878 = vld [vmem:[%s5] sm:$0xff]
        %v879 = vld [vmem:[%s5 + $0x8] sm:$0xff]
        %v880 = vld [vmem:[%s5 + $0x10] sm:$0xff]
        %v881 = vld [vmem:[%s5 + $0x18] sm:$0xff]
        %v882 = vld [vmem:[%s5 + $0x20] sm:$0xff]
        %v883 = vld [vmem:[%s5 + $0x28] sm:$0xff]
        %v884 = vld [vmem:[%s5 + $0x30] sm:$0xff]
        %v885 = vld [vmem:[%s5 + $0x38] sm:$0xff]
        %v886 = vld [vmem:[%s5 + $0x40] sm:$0xff]
        %v887 = vld [vmem:[%s5 + $0x48] sm:$0xff]
        %v888 = vld [vmem:[%s5 + $0x50] sm:$0xff]
        %v889 = vld [vmem:[%s5 + $0x58] sm:$0xff]
        %v890 = vld [vmem:[%s5 + $0x60] sm:$0xff]
        %v891 = vld [vmem:[%s5 + $0x68] sm:$0xff]
        %v892 = vld [vmem:[%s5 + $0x70] sm:$0xff]
        %v893 = vld [vmem:[%s5 + $0x78] sm:$0xff]
        %894 = vxpose.xlu0.c.b16.start [1/8] %v830, 128
        %895 = vxpose.xlu0.c.b16.cont [2/8] %v831, 128
        %896 = vxpose.xlu0.c.b16.cont [3/8] %v832, 128
        %897 = vxpose.xlu0.c.b16.cont [4/8] %v833, 128
        %898 = vxpose.xlu0.c.b16.cont [5/8] %v834, 128
        %899 = vxpose.xlu0.c.b16.cont [6/8] %v835, 128
        %900 = vxpose.xlu0.c.b16.cont [7/8] %v836, 128
        %901 = vxpose.xlu0.c.b16.end [8/8] %v837, 128
        %v902 = vpop.trf.xlu0
        %v903 = vpop.trf.xlu0
        %v904 = vpop.trf.xlu0
        %v905 = vpop.trf.xlu0
        %v906 = vpop.trf.xlu0
        %v907 = vpop.trf.xlu0
        %v908 = vpop.trf.xlu0
        %v909 = vpop.trf.xlu0
        %910 = vxpose.xlu0.c.b16.start [1/8] %v838, 128
        %911 = vxpose.xlu0.c.b16.cont [2/8] %v839, 128
        %912 = vxpose.xlu0.c.b16.cont [3/8] %v840, 128
        %913 = vxpose.xlu0.c.b16.cont [4/8] %v841, 128
        %914 = vxpose.xlu0.c.b16.cont [5/8] %v842, 128
        %915 = vxpose.xlu0.c.b16.cont [6/8] %v843, 128
        %916 = vxpose.xlu0.c.b16.cont [7/8] %v844, 128
        %917 = vxpose.xlu0.c.b16.end [8/8] %v845, 128
        %v918 = vpop.trf.xlu0
        %v919 = vpop.trf.xlu0
        %v920 = vpop.trf.xlu0
        %v921 = vpop.trf.xlu0
        %v922 = vpop.trf.xlu0
        %v923 = vpop.trf.xlu0
        %v924 = vpop.trf.xlu0
        %v925 = vpop.trf.xlu0
        %926 = vmatprep.subr.bf16.mxu0 0
        %927 = vmatpush1.bf16.msra.mxu0 %v853
        %928 = vmatprep.subr.bf16.mxu0 0
        %929 = vmatpush1.bf16.msra.mxu0 %v852
        %930 = vmatprep.subr.bf16.mxu0 0
        %931 = vmatpush1.bf16.msra.mxu0 %v851
        %932 = vmatprep.subr.bf16.mxu0 0
        %933 = vmatpush1.bf16.msra.mxu0 %v850
        %934 = vmatprep.subr.bf16.mxu0 0
        %935 = vmatpush1.bf16.msra.mxu0 %v849
        %936 = vmatprep.subr.bf16.mxu0 0
        %937 = vmatpush1.bf16.msra.mxu0 %v848
        %938 = vmatprep.subr.bf16.mxu0 0
        %939 = vmatpush1.bf16.msra.mxu0 %v847
        %940 = vmatprep.subr.bf16.mxu0 0
        %941 = vmatpush1.bf16.msra.mxu0 %v846
        %942 = vmatprep.subr.bf16.mxu0 0
        %943 = vmatpush2.bf16.msra.mxu0 %v861
        %944 = vmatprep.subr.bf16.mxu0 0
        %945 = vmatpush2.bf16.msra.mxu0 %v860
        %946 = vmatprep.subr.bf16.mxu0 0
        %947 = vmatpush2.bf16.msra.mxu0 %v859
        %948 = vmatprep.subr.bf16.mxu0 0
        %949 = vmatpush2.bf16.msra.mxu0 %v858
        %950 = vmatprep.subr.bf16.mxu0 0
        %951 = vmatpush2.bf16.msra.mxu0 %v857
        %952 = vmatprep.subr.bf16.mxu0 0
        %953 = vmatpush2.bf16.msra.mxu0 %v856
        %954 = vmatprep.subr.bf16.mxu0 0
        %955 = vmatpush2.bf16.msra.mxu0 %v855
        %956 = vmatprep.subr.bf16.mxu0 0
        %957 = vmatpush2.bf16.msra.mxu0 %v854
        %958 = vmatprep.mubr.bf16.mxu0 %v918
        %959 = vmatmul.mubr.bf16.gmra.mxu0 %v902
        %v960 = vpop.f32.mrf.mxu0
        %v961 = vadd.f32 0.0, %v960
        %v962 = vpop.f32.mrf.mxu0
        %v963 = vpop.f32.mrf.mxu0
        %v964 = vadd.f32 0.0, %v963
        %v965 = vpop.f32.mrf.mxu0
        %966 = vmatprep.mubr.bf16.mxu0 %v919
        %967 = vmatmul.mubr.bf16.gmra.mxu0 %v903
        %v968 = vpop.f32.mrf.mxu0
        %v969 = vadd.f32 0.0, %v968
        %v970 = vpop.f32.mrf.mxu0
        %v971 = vpop.f32.mrf.mxu0
        %v972 = vadd.f32 0.0, %v971
        %v973 = vpop.f32.mrf.mxu0
        %974 = vmatprep.mubr.bf16.mxu0 %v920
        %975 = vmatmul.mubr.bf16.gmra.mxu0 %v904
        %v976 = vpop.f32.mrf.mxu0
        %v977 = vadd.f32 0.0, %v976
        %v978 = vpop.f32.mrf.mxu0
        %v979 = vpop.f32.mrf.mxu0
        %v980 = vadd.f32 0.0, %v979
        %v981 = vpop.f32.mrf.mxu0
        %982 = vmatprep.mubr.bf16.mxu0 %v921
        %983 = vmatmul.mubr.bf16.gmra.mxu0 %v905
        %v984 = vpop.f32.mrf.mxu0
        %v985 = vadd.f32 0.0, %v984
        %v986 = vpop.f32.mrf.mxu0
        %v987 = vpop.f32.mrf.mxu0
        %v988 = vadd.f32 0.0, %v987
        %v989 = vpop.f32.mrf.mxu0
        %990 = vmatprep.mubr.bf16.mxu0 %v922
        %991 = vmatmul.mubr.bf16.gmra.mxu0 %v906
        %v992 = vpop.f32.mrf.mxu0
        %v993 = vadd.f32 0.0, %v992
        %v994 = vpop.f32.mrf.mxu0
        %v995 = vpop.f32.mrf.mxu0
        %v996 = vadd.f32 0.0, %v995
        %v997 = vpop.f32.mrf.mxu0
        %998 = vmatprep.mubr.bf16.mxu0 %v923
        %999 = vmatmul.mubr.bf16.gmra.mxu0 %v907
        %v1000 = vpop.f32.mrf.mxu0
        %v1001 = vadd.f32 0.0, %v1000
        %v1002 = vpop.f32.mrf.mxu0
        %v1003 = vpop.f32.mrf.mxu0
        %v1004 = vadd.f32 0.0, %v1003
        %v1005 = vpop.f32.mrf.mxu0
        %1006 = vmatprep.mubr.bf16.mxu0 %v924
        %1007 = vmatmul.mubr.bf16.gmra.mxu0 %v908
        %v1008 = vpop.f32.mrf.mxu0
        %v1009 = vadd.f32 0.0, %v1008
        %v1010 = vpop.f32.mrf.mxu0
        %v1011 = vpop.f32.mrf.mxu0
        %v1012 = vadd.f32 0.0, %v1011
        %v1013 = vpop.f32.mrf.mxu0
        %1014 = vmatprep.mubr.bf16.mxu0 %v925
        %1015 = vmatmul.mubr.bf16.gmra.mxu0 %v909
        %v1016 = vpop.f32.mrf.mxu0
        %v1017 = vadd.f32 0.0, %v1016
        %v1018 = vpop.f32.mrf.mxu0
        %v1019 = vpop.f32.mrf.mxu0
        %v1020 = vadd.f32 0.0, %v1019
        %v1021 = vpop.f32.mrf.mxu0
        %1022 = vdwg.mxu0
        %v1023 = vmul.f32 %v961, 0.0625
        %v1024 = vmul.f32 %v964, 0.0625
        %v1025 = vmul.f32 %v969, 0.0625
        %v1026 = vmul.f32 %v972, 0.0625
        %v1027 = vmul.f32 %v977, 0.0625
        %v1028 = vmul.f32 %v980, 0.0625
        %v1029 = vmul.f32 %v985, 0.0625
        %v1030 = vmul.f32 %v988, 0.0625
        %v1031 = vmul.f32 %v993, 0.0625
        %v1032 = vmul.f32 %v996, 0.0625
        %v1033 = vmul.f32 %v1001, 0.0625
        %v1034 = vmul.f32 %v1004, 0.0625
        %v1035 = vmul.f32 %v1009, 0.0625
        %v1036 = vmul.f32 %v1012, 0.0625
        %v1037 = vmul.f32 %v1017, 0.0625
        %v1038 = vmul.f32 %v1020, 0.0625
        %v1039 = vadd.f32 %v1023, %v878
        %v1040 = vadd.f32 %v1024, %v879
        %v1041 = vadd.f32 %v1025, %v880
        %v1042 = vadd.f32 %v1026, %v881
        %v1043 = vadd.f32 %v1027, %v882
        %v1044 = vadd.f32 %v1028, %v883
        %v1045 = vadd.f32 %v1029, %v884
        %v1046 = vadd.f32 %v1030, %v885
        %v1047 = vadd.f32 %v1031, %v886
        %v1048 = vadd.f32 %v1032, %v887
        %v1049 = vadd.f32 %v1033, %v888
        %v1050 = vadd.f32 %v1034, %v889
        %v1051 = vadd.f32 %v1035, %v890
        %v1052 = vadd.f32 %v1036, %v891
        %v1053 = vadd.f32 %v1037, %v892
        %v1054 = vadd.f32 %v1038, %v893
        %1055 = vmax.xlane.f32.xlu0 %v1039
        %v1056 = vpop.xlane.xlu0 %1055
        %1057 = vmax.xlane.f32.xlu0 %v1040
        %v1058 = vpop.xlane.xlu0 %1057
        %1059 = vmax.xlane.f32.xlu0 %v1041
        %v1060 = vpop.xlane.xlu0 %1059
        %1061 = vmax.xlane.f32.xlu0 %v1042
        %v1062 = vpop.xlane.xlu0 %1061
        %1063 = vmax.xlane.f32.xlu0 %v1043
        %v1064 = vpop.xlane.xlu0 %1063
        %1065 = vmax.xlane.f32.xlu0 %v1044
        %v1066 = vpop.xlane.xlu0 %1065
        %1067 = vmax.xlane.f32.xlu0 %v1045
        %v1068 = vpop.xlane.xlu0 %1067
        %1069 = vmax.xlane.f32.xlu0 %v1046
        %v1070 = vpop.xlane.xlu0 %1069
        %1071 = vmax.xlane.f32.xlu0 %v1047
        %v1072 = vpop.xlane.xlu0 %1071
        %1073 = vmax.xlane.f32.xlu0 %v1048
        %v1074 = vpop.xlane.xlu0 %1073
        %1075 = vmax.xlane.f32.xlu0 %v1049
        %v1076 = vpop.xlane.xlu0 %1075
        %1077 = vmax.xlane.f32.xlu0 %v1050
        %v1078 = vpop.xlane.xlu0 %1077
        %1079 = vmax.xlane.f32.xlu0 %v1051
        %v1080 = vpop.xlane.xlu0 %1079
        %1081 = vmax.xlane.f32.xlu0 %v1052
        %v1082 = vpop.xlane.xlu0 %1081
        %1083 = vmax.xlane.f32.xlu0 %v1053
        %v1084 = vpop.xlane.xlu0 %1083
        %1085 = vmax.xlane.f32.xlu0 %v1054
        %v1086 = vpop.xlane.xlu0 %1085
        %v1087 = vsub.f32 %v1039, %v1056
        %v1088 = vsub.f32 %v1040, %v1058
        %v1089 = vsub.f32 %v1041, %v1060
        %v1090 = vsub.f32 %v1042, %v1062
        %v1091 = vsub.f32 %v1043, %v1064
        %v1092 = vsub.f32 %v1044, %v1066
        %v1093 = vsub.f32 %v1045, %v1068
        %v1094 = vsub.f32 %v1046, %v1070
        %v1095 = vsub.f32 %v1047, %v1072
        %v1096 = vsub.f32 %v1048, %v1074
        %v1097 = vsub.f32 %v1049, %v1076
        %v1098 = vsub.f32 %v1050, %v1078
        %v1099 = vsub.f32 %v1051, %v1080
        %v1100 = vsub.f32 %v1052, %v1082
        %v1101 = vsub.f32 %v1053, %v1084
        %v1102 = vsub.f32 %v1054, %v1086
        %v1103 = vmul.f32 %v1087, 1.442695
        %v1104 = vpow.pop %v1103
        %v1105 = vmul.f32 %v1088, 1.442695
        %v1106 = vpow.pop %v1105
        %v1107 = vmul.f32 %v1089, 1.442695
        %v1108 = vpow.pop %v1107
        %v1109 = vmul.f32 %v1090, 1.442695
        %v1110 = vpow.pop %v1109
        %v1111 = vmul.f32 %v1091, 1.442695
        %v1112 = vpow.pop %v1111
        %v1113 = vmul.f32 %v1092, 1.442695
        %v1114 = vpow.pop %v1113
        %v1115 = vmul.f32 %v1093, 1.442695
        %v1116 = vpow.pop %v1115
        %v1117 = vmul.f32 %v1094, 1.442695
        %v1118 = vpow.pop %v1117
        %v1119 = vmul.f32 %v1095, 1.442695
        %v1120 = vpow.pop %v1119
        %v1121 = vmul.f32 %v1096, 1.442695
        %v1122 = vpow.pop %v1121
        %v1123 = vmul.f32 %v1097, 1.442695
        %v1124 = vpow.pop %v1123
        %v1125 = vmul.f32 %v1098, 1.442695
        %v1126 = vpow.pop %v1125
        %v1127 = vmul.f32 %v1099, 1.442695
        %v1128 = vpow.pop %v1127
        %v1129 = vmul.f32 %v1100, 1.442695
        %v1130 = vpow.pop %v1129
        %v1131 = vmul.f32 %v1101, 1.442695
        %v1132 = vpow.pop %v1131
        %v1133 = vmul.f32 %v1102, 1.442695
        %v1134 = vpow.pop %v1133
        %1135 = vadd.xlane.f32.xlu0 %v1104
        %v1136 = vpop.xlane.xlu0 %1135
        %1137 = vadd.xlane.f32.xlu0 %v1106
        %v1138 = vpop.xlane.xlu0 %1137
        %1139 = vadd.xlane.f32.xlu0 %v1108
        %v1140 = vpop.xlane.xlu0 %1139
        %1141 = vadd.xlane.f32.xlu0 %v1110
        %v1142 = vpop.xlane.xlu0 %1141
        %1143 = vadd.xlane.f32.xlu0 %v1112
        %v1144 = vpop.xlane.xlu0 %1143
        %1145 = vadd.xlane.f32.xlu0 %v1114
        %v1146 = vpop.xlane.xlu0 %1145
        %1147 = vadd.xlane.f32.xlu0 %v1116
        %v1148 = vpop.xlane.xlu0 %1147
        %1149 = vadd.xlane.f32.xlu0 %v1118
        %v1150 = vpop.xlane.xlu0 %1149
        %1151 = vadd.xlane.f32.xlu0 %v1120
        %v1152 = vpop.xlane.xlu0 %1151
        %1153 = vadd.xlane.f32.xlu0 %v1122
        %v1154 = vpop.xlane.xlu0 %1153
        %1155 = vadd.xlane.f32.xlu0 %v1124
        %v1156 = vpop.xlane.xlu0 %1155
        %1157 = vadd.xlane.f32.xlu0 %v1126
        %v1158 = vpop.xlane.xlu0 %1157
        %1159 = vadd.xlane.f32.xlu0 %v1128
        %v1160 = vpop.xlane.xlu0 %1159
        %1161 = vadd.xlane.f32.xlu0 %v1130
        %v1162 = vpop.xlane.xlu0 %1161
        %1163 = vadd.xlane.f32.xlu0 %v1132
        %v1164 = vpop.xlane.xlu0 %1163
        %1165 = vadd.xlane.f32.xlu0 %v1134
        %v1166 = vpop.xlane.xlu0 %1165
        %v1167 = vrcp.pop %v1136
        %v1168 = vrcp.pop %v1138
        %v1169 = vrcp.pop %v1140
        %v1170 = vrcp.pop %v1142
        %v1171 = vrcp.pop %v1144
        %v1172 = vrcp.pop %v1146
        %v1173 = vrcp.pop %v1148
        %v1174 = vrcp.pop %v1150
        %v1175 = vrcp.pop %v1152
        %v1176 = vrcp.pop %v1154
        %v1177 = vrcp.pop %v1156
        %v1178 = vrcp.pop %v1158
        %v1179 = vrcp.pop %v1160
        %v1180 = vrcp.pop %v1162
        %v1181 = vrcp.pop %v1164
        %v1182 = vrcp.pop %v1166
        %v1183 = vmul.f32 %v1104, %v1167
        %v1184 = vmul.f32 %v1106, %v1168
        %v1185 = vmul.f32 %v1108, %v1169
        %v1186 = vmul.f32 %v1110, %v1170
        %v1187 = vmul.f32 %v1112, %v1171
        %v1188 = vmul.f32 %v1114, %v1172
        %v1189 = vmul.f32 %v1116, %v1173
        %v1190 = vmul.f32 %v1118, %v1174
        %v1191 = vmul.f32 %v1120, %v1175
        %v1192 = vmul.f32 %v1122, %v1176
        %v1193 = vmul.f32 %v1124, %v1177
        %v1194 = vmul.f32 %v1126, %v1178
        %v1195 = vmul.f32 %v1128, %v1179
        %v1196 = vmul.f32 %v1130, %v1180
        %v1197 = vmul.f32 %v1132, %v1181
        %v1198 = vmul.f32 %v1134, %v1182
        %v1199 = vpack.c.bf16 %v1184, %v1183
        %v1200 = vpack.c.bf16 %v1186, %v1185
        %v1201 = vpack.c.bf16 %v1188, %v1187
        %v1202 = vpack.c.bf16 %v1190, %v1189
        %v1203 = vpack.c.bf16 %v1192, %v1191
        %v1204 = vpack.c.bf16 %v1194, %v1193
        %v1205 = vpack.c.bf16 %v1196, %v1195
        %v1206 = vpack.c.bf16 %v1198, %v1197
        %1207 = vmatprep.subr.bf16.mxu0 0
        %1208 = vmatpush1.bf16.xpose.msra.mxu0 %v1206
        %1209 = vmatprep.subr.bf16.mxu0 0
        %1210 = vmatpush1.bf16.xpose.msra.mxu0 %v1205
        %1211 = vmatprep.subr.bf16.mxu0 0
        %1212 = vmatpush1.bf16.xpose.msra.mxu0 %v1204
        %1213 = vmatprep.subr.bf16.mxu0 0
        %1214 = vmatpush1.bf16.xpose.msra.mxu0 %v1203
        %1215 = vmatprep.subr.bf16.mxu0 0
        %1216 = vmatpush1.bf16.xpose.msra.mxu0 %v1202
        %1217 = vmatprep.subr.bf16.mxu0 0
        %1218 = vmatpush1.bf16.xpose.msra.mxu0 %v1201
        %1219 = vmatprep.subr.bf16.mxu0 0
        %1220 = vmatpush1.bf16.xpose.msra.mxu0 %v1200
        %1221 = vmatprep.subr.bf16.mxu0 0
        %1222 = vmatpush1.bf16.xpose.msra.mxu0 %v1199
        %1223 = vmatprep.subr.bf16.mxu0 0
        %1224 = vmatpush2.bf16.xpose.msra.mxu0 0
        %1225 = vmatprep.subr.bf16.mxu0 0
        %1226 = vmatpush2.bf16.xpose.msra.mxu0 0
        %1227 = vmatprep.subr.bf16.mxu0 0
        %1228 = vmatpush2.bf16.xpose.msra.mxu0 0
        %1229 = vmatprep.subr.bf16.mxu0 0
        %1230 = vmatpush2.bf16.xpose.msra.mxu0 0
        %1231 = vmatprep.subr.bf16.mxu0 0
        %1232 = vmatpush2.bf16.xpose.msra.mxu0 0
        %1233 = vmatprep.subr.bf16.mxu0 0
        %1234 = vmatpush2.bf16.xpose.msra.mxu0 0
        %1235 = vmatprep.subr.bf16.mxu0 0
        %1236 = vmatpush2.bf16.xpose.msra.mxu0 0
        %1237 = vmatprep.subr.bf16.mxu0 0
        %1238 = vmatpush2.bf16.xpose.msra.mxu0 0
        %1239 = vmatprep.mubr.bf16.mxu0 0
        %1240 = vmatmul.mubr.bf16.gmra.mxu0 %v862
        %v1241 = vpop.f32.mrf.mxu0
        %v1242 = vadd.f32 0.0, %v1241
        %v1243 = vpop.f32.mrf.mxu0
        %v1244 = vpop.f32.mrf.mxu0
        %v1245 = vadd.f32 0.0, %v1244
        %v1246 = vpop.f32.mrf.mxu0
        %1247 = vmatprep.mubr.bf16.mxu0 0
        %1248 = vmatmul.mubr.bf16.gmra.mxu0 %v863
        %v1249 = vpop.f32.mrf.mxu0
        %v1250 = vadd.f32 0.0, %v1249
        %v1251 = vpop.f32.mrf.mxu0
        %v1252 = vpop.f32.mrf.mxu0
        %v1253 = vadd.f32 0.0, %v1252
        %v1254 = vpop.f32.mrf.mxu0
        %1255 = vmatprep.mubr.bf16.mxu0 0
        %1256 = vmatmul.mubr.bf16.gmra.mxu0 %v864
        %v1257 = vpop.f32.mrf.mxu0
        %v1258 = vadd.f32 0.0, %v1257
        %v1259 = vpop.f32.mrf.mxu0
        %v1260 = vpop.f32.mrf.mxu0
        %v1261 = vadd.f32 0.0, %v1260
        %v1262 = vpop.f32.mrf.mxu0
        %1263 = vmatprep.mubr.bf16.mxu0 0
        %1264 = vmatmul.mubr.bf16.gmra.mxu0 %v865
        %v1265 = vpop.f32.mrf.mxu0
        %v1266 = vadd.f32 0.0, %v1265
        %v1267 = vpop.f32.mrf.mxu0
        %v1268 = vpop.f32.mrf.mxu0
        %v1269 = vadd.f32 0.0, %v1268
        %v1270 = vpop.f32.mrf.mxu0
        %1271 = vmatprep.mubr.bf16.mxu0 0
        %1272 = vmatmul.mubr.bf16.gmra.mxu0 %v866
        %v1273 = vpop.f32.mrf.mxu0
        %v1274 = vadd.f32 0.0, %v1273
        %v1275 = vpop.f32.mrf.mxu0
        %v1276 = vpop.f32.mrf.mxu0
        %v1277 = vadd.f32 0.0, %v1276
        %v1278 = vpop.f32.mrf.mxu0
        %1279 = vmatprep.mubr.bf16.mxu0 0
        %1280 = vmatmul.mubr.bf16.gmra.mxu0 %v867
        %v1281 = vpop.f32.mrf.mxu0
        %v1282 = vadd.f32 0.0, %v1281
        %v1283 = vpop.f32.mrf.mxu0
        %v1284 = vpop.f32.mrf.mxu0
        %v1285 = vadd.f32 0.0, %v1284
        %v1286 = vpop.f32.mrf.mxu0
        %1287 = vmatprep.mubr.bf16.mxu0 0
        %1288 = vmatmul.mubr.bf16.gmra.mxu0 %v868
        %v1289 = vpop.f32.mrf.mxu0
        %v1290 = vadd.f32 0.0, %v1289
        %v1291 = vpop.f32.mrf.mxu0
        %v1292 = vpop.f32.mrf.mxu0
        %v1293 = vadd.f32 0.0, %v1292
        %v1294 = vpop.f32.mrf.mxu0
        %1295 = vmatprep.mubr.bf16.mxu0 0
        %1296 = vmatmul.mubr.bf16.gmra.mxu0 %v869
        %v1297 = vpop.f32.mrf.mxu0
        %v1298 = vadd.f32 0.0, %v1297
        %v1299 = vpop.f32.mrf.mxu0
        %v1300 = vpop.f32.mrf.mxu0
        %v1301 = vadd.f32 0.0, %v1300
        %v1302 = vpop.f32.mrf.mxu0
        %1303 = vmatprep.mubr.bf16.mxu0 0
        %1304 = vmatmul.mubr.bf16.gmra.mxu0 %v870
        %v1305 = vpop.f32.mrf.mxu0
        %v1306 = vadd.f32 0.0, %v1305
        %v1307 = vpop.f32.mrf.mxu0
        %v1308 = vpop.f32.mrf.mxu0
        %v1309 = vadd.f32 0.0, %v1308
        %v1310 = vpop.f32.mrf.mxu0
        %1311 = vmatprep.mubr.bf16.mxu0 0
        %1312 = vmatmul.mubr.bf16.gmra.mxu0 %v871
        %v1313 = vpop.f32.mrf.mxu0
        %v1314 = vadd.f32 0.0, %v1313
        %v1315 = vpop.f32.mrf.mxu0
        %v1316 = vpop.f32.mrf.mxu0
        %v1317 = vadd.f32 0.0, %v1316
        %v1318 = vpop.f32.mrf.mxu0
        %1319 = vmatprep.mubr.bf16.mxu0 0
        %1320 = vmatmul.mubr.bf16.gmra.mxu0 %v872
        %v1321 = vpop.f32.mrf.mxu0
        %v1322 = vadd.f32 0.0, %v1321
        %v1323 = vpop.f32.mrf.mxu0
        %v1324 = vpop.f32.mrf.mxu0
        %v1325 = vadd.f32 0.0, %v1324
        %v1326 = vpop.f32.mrf.mxu0
        %1327 = vmatprep.mubr.bf16.mxu0 0
        %1328 = vmatmul.mubr.bf16.gmra.mxu0 %v873
        %v1329 = vpop.f32.mrf.mxu0
        %v1330 = vadd.f32 0.0, %v1329
        %v1331 = vpop.f32.mrf.mxu0
        %v1332 = vpop.f32.mrf.mxu0
        %v1333 = vadd.f32 0.0, %v1332
        %v1334 = vpop.f32.mrf.mxu0
        %1335 = vmatprep.mubr.bf16.mxu0 0
        %1336 = vmatmul.mubr.bf16.gmra.mxu0 %v874
        %v1337 = vpop.f32.mrf.mxu0
        %v1338 = vadd.f32 0.0, %v1337
        %v1339 = vpop.f32.mrf.mxu0
        %v1340 = vpop.f32.mrf.mxu0
        %v1341 = vadd.f32 0.0, %v1340
        %v1342 = vpop.f32.mrf.mxu0
        %1343 = vmatprep.mubr.bf16.mxu0 0
        %1344 = vmatmul.mubr.bf16.gmra.mxu0 %v875
        %v1345 = vpop.f32.mrf.mxu0
        %v1346 = vadd.f32 0.0, %v1345
        %v1347 = vpop.f32.mrf.mxu0
        %v1348 = vpop.f32.mrf.mxu0
        %v1349 = vadd.f32 0.0, %v1348
        %v1350 = vpop.f32.mrf.mxu0
        %1351 = vmatprep.mubr.bf16.mxu0 0
        %1352 = vmatmul.mubr.bf16.gmra.mxu0 %v876
        %v1353 = vpop.f32.mrf.mxu0
        %v1354 = vadd.f32 0.0, %v1353
        %v1355 = vpop.f32.mrf.mxu0
        %v1356 = vpop.f32.mrf.mxu0
        %v1357 = vadd.f32 0.0, %v1356
        %v1358 = vpop.f32.mrf.mxu0
        %1359 = vmatprep.mubr.bf16.mxu0 0
        %1360 = vmatmul.mubr.bf16.gmra.mxu0 %v877
        %v1361 = vpop.f32.mrf.mxu0
        %v1362 = vadd.f32 0.0, %v1361
        %v1363 = vpop.f32.mrf.mxu0
        %v1364 = vpop.f32.mrf.mxu0
        %v1365 = vadd.f32 0.0, %v1364
        %v1366 = vpop.f32.mrf.mxu0
        %1367 = vdwg.mxu0
        %v1368 = vpack.c.bf16 %v1245, %v1242
        %v1369 = vpack.c.bf16 %v1253, %v1250
        %v1370 = vpack.c.bf16 %v1261, %v1258
        %v1371 = vpack.c.bf16 %v1269, %v1266
        %v1372 = vpack.c.bf16 %v1277, %v1274
        %v1373 = vpack.c.bf16 %v1285, %v1282
        %v1374 = vpack.c.bf16 %v1293, %v1290
        %v1375 = vpack.c.bf16 %v1301, %v1298
        %v1376 = vpack.c.bf16 %v1309, %v1306
        %v1377 = vpack.c.bf16 %v1317, %v1314
        %v1378 = vpack.c.bf16 %v1325, %v1322
        %v1379 = vpack.c.bf16 %v1333, %v1330
        %v1380 = vpack.c.bf16 %v1341, %v1338
        %v1381 = vpack.c.bf16 %v1349, %v1346
        %v1382 = vpack.c.bf16 %v1357, %v1354
        %v1383 = vpack.c.bf16 %v1365, %v1362
        %v1384 = vld [vmem:[%s3] sm:$0xf]
        %v1385 = vld [vmem:[%s3 + $0x4] sm:$0xf]
        %v1386 = vld [vmem:[%s3 + $0x8] sm:$0xf]
        %v1387 = vld [vmem:[%s3 + $0xc] sm:$0xf]
        %v1388 = vld [vmem:[%s3 + $0x10] sm:$0xf]
        %v1389 = vld [vmem:[%s3 + $0x14] sm:$0xf]
        %v1390 = vld [vmem:[%s3 + $0x18] sm:$0xf]
        %v1391 = vld [vmem:[%s3 + $0x1c] sm:$0xf]
        %v1392 = vld [vmem:[%s3 + $0x20] sm:$0xf]
        %v1393 = vld [vmem:[%s3 + $0x24] sm:$0xf]
        %v1394 = vld [vmem:[%s3 + $0x28] sm:$0xf]
        %v1395 = vld [vmem:[%s3 + $0x2c] sm:$0xf]
        %v1396 = vld [vmem:[%s3 + $0x30] sm:$0xf]
        %v1397 = vld [vmem:[%s3 + $0x34] sm:$0xf]
        %v1398 = vld [vmem:[%s3 + $0x38] sm:$0xf]
        %v1399 = vld [vmem:[%s3 + $0x3c] sm:$0xf]
        %v1400 = vld [vmem:[%s4] sm:$0x1]
        %v1402 = vlaneseq
        %v1403 = vshrl.u32 %v1402, 7
        %v1404 = vsub.s32 0, %v1403
        %v1405 = vrot.slane %v1400, %v1404
        %v1423 = vunpack.c.l.b16 %v1384
        %v1424 = vunpack.c.l.b16 %v1385
        %v1425 = vunpack.c.l.b16 %v1386
        %v1426 = vunpack.c.l.b16 %v1387
        %v1427 = vunpack.c.l.b16 %v1388
        %v1428 = vunpack.c.l.b16 %v1389
        %v1429 = vunpack.c.l.b16 %v1390
        %v1430 = vunpack.c.l.b16 %v1391
        %v1431 = vunpack.c.l.b16 %v1392
        %v1432 = vunpack.c.l.b16 %v1393
        %v1433 = vunpack.c.l.b16 %v1394
        %v1434 = vunpack.c.l.b16 %v1395
        %v1435 = vunpack.c.l.b16 %v1396
        %v1436 = vunpack.c.l.b16 %v1397
        %v1437 = vunpack.c.l.b16 %v1398
        %v1438 = vunpack.c.l.b16 %v1399
        %v1439 = vpack.c.b16 %v1424, %v1423
        %v1440 = vpack.c.b16 %v1426, %v1425
        %v1441 = vpack.c.b16 %v1428, %v1427
        %v1442 = vpack.c.b16 %v1430, %v1429
        %v1443 = vpack.c.b16 %v1432, %v1431
        %v1444 = vpack.c.b16 %v1434, %v1433
        %v1445 = vpack.c.b16 %v1436, %v1435
        %v1446 = vpack.c.b16 %v1438, %v1437
        %1455 = vmatprep.subr.bf16.mxu0 0
        %1456 = vmatpush1.bf16.msra.mxu0 %v1446
        %1457 = vmatprep.subr.bf16.mxu0 0
        %1458 = vmatpush1.bf16.msra.mxu0 %v1445
        %1459 = vmatprep.subr.bf16.mxu0 0
        %1460 = vmatpush1.bf16.msra.mxu0 %v1444
        %1461 = vmatprep.subr.bf16.mxu0 0
        %1462 = vmatpush1.bf16.msra.mxu0 %v1443
        %1463 = vmatprep.subr.bf16.mxu0 0
        %1464 = vmatpush1.bf16.msra.mxu0 %v1442
        %1465 = vmatprep.subr.bf16.mxu0 0
        %1466 = vmatpush1.bf16.msra.mxu0 %v1441
        %1467 = vmatprep.subr.bf16.mxu0 0
        %1468 = vmatpush1.bf16.msra.mxu0 %v1440
        %1469 = vmatprep.subr.bf16.mxu0 0
        %1470 = vmatpush1.bf16.msra.mxu0 %v1439
        %1471 = vmatprep.subr.bf16.mxu0 0
        %1472 = vmatpush2.bf16.msra.mxu0 0
        %1473 = vmatprep.subr.bf16.mxu0 0
        %1474 = vmatpush2.bf16.msra.mxu0 0
        %1475 = vmatprep.subr.bf16.mxu0 0
        %1476 = vmatpush2.bf16.msra.mxu0 0
        %1477 = vmatprep.subr.bf16.mxu0 0
        %1478 = vmatpush2.bf16.msra.mxu0 0
        %1479 = vmatprep.subr.bf16.mxu0 0
        %1480 = vmatpush2.bf16.msra.mxu0 0
        %1481 = vmatprep.subr.bf16.mxu0 0
        %1482 = vmatpush2.bf16.msra.mxu0 0
        %1483 = vmatprep.subr.bf16.mxu0 0
        %1484 = vmatpush2.bf16.msra.mxu0 0
        %1485 = vmatprep.subr.bf16.mxu0 0
        %1486 = vmatpush2.bf16.msra.mxu0 0
        %1487 = vmatprep.mubr.bf16.mxu0 0
        %1488 = vmatmul.mubr.bf16.gmra.mxu0 %v1368
        %v1489 = vpop.f32.mrf.mxu0
        %v1490 = vadd.f32 %v1405, %v1489
        %v1491 = vpop.f32.mrf.mxu0
        %v1492 = vpop.f32.mrf.mxu0
        %v1493 = vadd.f32 %v1405, %v1492
        %v1494 = vpop.f32.mrf.mxu0
        %1495 = vmatprep.mubr.bf16.mxu0 0
        %1496 = vmatmul.mubr.bf16.gmra.mxu0 %v1369
        %v1497 = vpop.f32.mrf.mxu0
        %v1498 = vadd.f32 %v1405, %v1497
        %v1499 = vpop.f32.mrf.mxu0
        %v1500 = vpop.f32.mrf.mxu0
        %v1501 = vadd.f32 %v1405, %v1500
        %v1502 = vpop.f32.mrf.mxu0
        %1503 = vmatprep.mubr.bf16.mxu0 0
        %1504 = vmatmul.mubr.bf16.gmra.mxu0 %v1370
        %v1505 = vpop.f32.mrf.mxu0
        %v1506 = vadd.f32 %v1405, %v1505
        %v1507 = vpop.f32.mrf.mxu0
        %v1508 = vpop.f32.mrf.mxu0
        %v1509 = vadd.f32 %v1405, %v1508
        %v1510 = vpop.f32.mrf.mxu0
        %1511 = vmatprep.mubr.bf16.mxu0 0
        %1512 = vmatmul.mubr.bf16.gmra.mxu0 %v1371
        %v1513 = vpop.f32.mrf.mxu0
        %v1514 = vadd.f32 %v1405, %v1513
        %v1515 = vpop.f32.mrf.mxu0
        %v1516 = vpop.f32.mrf.mxu0
        %v1517 = vadd.f32 %v1405, %v1516
        %v1518 = vpop.f32.mrf.mxu0
        %1519 = vmatprep.mubr.bf16.mxu0 0
        %1520 = vmatmul.mubr.bf16.gmra.mxu0 %v1372
        %v1521 = vpop.f32.mrf.mxu0
        %v1522 = vadd.f32 %v1405, %v1521
        %v1523 = vpop.f32.mrf.mxu0
        %v1524 = vpop.f32.mrf.mxu0
        %v1525 = vadd.f32 %v1405, %v1524
        %v1526 = vpop.f32.mrf.mxu0
        %1527 = vmatprep.mubr.bf16.mxu0 0
        %1528 = vmatmul.mubr.bf16.gmra.mxu0 %v1373
        %v1529 = vpop.f32.mrf.mxu0
        %v1530 = vadd.f32 %v1405, %v1529
        %v1531 = vpop.f32.mrf.mxu0
        %v1532 = vpop.f32.mrf.mxu0
        %v1533 = vadd.f32 %v1405, %v1532
        %v1534 = vpop.f32.mrf.mxu0
        %1535 = vmatprep.mubr.bf16.mxu0 0
        %1536 = vmatmul.mubr.bf16.gmra.mxu0 %v1374
        %v1537 = vpop.f32.mrf.mxu0
        %v1538 = vadd.f32 %v1405, %v1537
        %v1539 = vpop.f32.mrf.mxu0
        %v1540 = vpop.f32.mrf.mxu0
        %v1541 = vadd.f32 %v1405, %v1540
        %v1542 = vpop.f32.mrf.mxu0
        %1543 = vmatprep.mubr.bf16.mxu0 0
        %1544 = vmatmul.mubr.bf16.gmra.mxu0 %v1375
        %v1545 = vpop.f32.mrf.mxu0
        %v1546 = vadd.f32 %v1405, %v1545
        %v1547 = vpop.f32.mrf.mxu0
        %v1548 = vpop.f32.mrf.mxu0
        %v1549 = vadd.f32 %v1405, %v1548
        %v1550 = vpop.f32.mrf.mxu0
        %1551 = vmatprep.mubr.bf16.mxu0 0
        %1552 = vmatmul.mubr.bf16.gmra.mxu0 %v1376
        %v1553 = vpop.f32.mrf.mxu0
        %v1554 = vadd.f32 %v1405, %v1553
        %v1555 = vpop.f32.mrf.mxu0
        %v1556 = vpop.f32.mrf.mxu0
        %v1557 = vadd.f32 %v1405, %v1556
        %v1558 = vpop.f32.mrf.mxu0
        %1559 = vmatprep.mubr.bf16.mxu0 0
        %1560 = vmatmul.mubr.bf16.gmra.mxu0 %v1377
        %v1561 = vpop.f32.mrf.mxu0
        %v1562 = vadd.f32 %v1405, %v1561
        %v1563 = vpop.f32.mrf.mxu0
        %v1564 = vpop.f32.mrf.mxu0
        %v1565 = vadd.f32 %v1405, %v1564
        %v1566 = vpop.f32.mrf.mxu0
        %1567 = vmatprep.mubr.bf16.mxu0 0
        %1568 = vmatmul.mubr.bf16.gmra.mxu0 %v1378
        %v1569 = vpop.f32.mrf.mxu0
        %v1570 = vadd.f32 %v1405, %v1569
        %v1571 = vpop.f32.mrf.mxu0
        %v1572 = vpop.f32.mrf.mxu0
        %v1573 = vadd.f32 %v1405, %v1572
        %v1574 = vpop.f32.mrf.mxu0
        %1575 = vmatprep.mubr.bf16.mxu0 0
        %1576 = vmatmul.mubr.bf16.gmra.mxu0 %v1379
        %v1577 = vpop.f32.mrf.mxu0
        %v1578 = vadd.f32 %v1405, %v1577
        %v1579 = vpop.f32.mrf.mxu0
        %v1580 = vpop.f32.mrf.mxu0
        %v1581 = vadd.f32 %v1405, %v1580
        %v1582 = vpop.f32.mrf.mxu0
        %1583 = vmatprep.mubr.bf16.mxu0 0
        %1584 = vmatmul.mubr.bf16.gmra.mxu0 %v1380
        %v1585 = vpop.f32.mrf.mxu0
        %v1586 = vadd.f32 %v1405, %v1585
        %v1587 = vpop.f32.mrf.mxu0
        %v1588 = vpop.f32.mrf.mxu0
        %v1589 = vadd.f32 %v1405, %v1588
        %v1590 = vpop.f32.mrf.mxu0
        %1591 = vmatprep.mubr.bf16.mxu0 0
        %1592 = vmatmul.mubr.bf16.gmra.mxu0 %v1381
        %v1593 = vpop.f32.mrf.mxu0
        %v1594 = vadd.f32 %v1405, %v1593
        %v1595 = vpop.f32.mrf.mxu0
        %v1596 = vpop.f32.mrf.mxu0
        %v1597 = vadd.f32 %v1405, %v1596
        %v1598 = vpop.f32.mrf.mxu0
        %1599 = vmatprep.mubr.bf16.mxu0 0
        %1600 = vmatmul.mubr.bf16.gmra.mxu0 %v1382
        %v1601 = vpop.f32.mrf.mxu0
        %v1602 = vadd.f32 %v1405, %v1601
        %v1603 = vpop.f32.mrf.mxu0
        %v1604 = vpop.f32.mrf.mxu0
        %v1605 = vadd.f32 %v1405, %v1604
        %v1606 = vpop.f32.mrf.mxu0
        %1607 = vmatprep.mubr.bf16.mxu0 0
        %1608 = vmatmul.mubr.bf16.gmra.mxu0 %v1383
        %v1609 = vpop.f32.mrf.mxu0
        %v1610 = vadd.f32 %v1405, %v1609
        %v1611 = vpop.f32.mrf.mxu0
        %v1612 = vpop.f32.mrf.mxu0
        %v1613 = vadd.f32 %v1405, %v1612
        %v1614 = vpop.f32.mrf.mxu0
        %1615 = vdwg.mxu0
        %1616 = vst [vmem:[%s244] sm:$0xff] %v1490
        %1617 = vst [vmem:[%s244 + $0x8] sm:$0xff] %v1493
        %1618 = vst [vmem:[%s244 + $0x10] sm:$0xff] %v1498
        %1619 = vst [vmem:[%s244 + $0x18] sm:$0xff] %v1501
        %1620 = vst [vmem:[%s244 + $0x20] sm:$0xff] %v1506
        %1621 = vst [vmem:[%s244 + $0x28] sm:$0xff] %v1509
        %1622 = vst [vmem:[%s244 + $0x30] sm:$0xff] %v1514
        %1623 = vst [vmem:[%s244 + $0x38] sm:$0xff] %v1517
        %1624 = vst [vmem:[%s244 + $0x40] sm:$0xff] %v1522
        %1625 = vst [vmem:[%s244 + $0x48] sm:$0xff] %v1525
        %1626 = vst [vmem:[%s244 + $0x50] sm:$0xff] %v1530
        %1627 = vst [vmem:[%s244 + $0x58] sm:$0xff] %v1533
        %1628 = vst [vmem:[%s244 + $0x60] sm:$0xff] %v1538
        %1629 = vst [vmem:[%s244 + $0x68] sm:$0xff] %v1541
        %1630 = vst [vmem:[%s244 + $0x70] sm:$0xff] %v1546
        %1631 = vst [vmem:[%s244 + $0x78] sm:$0xff] %v1549
        %1632 = vst [vmem:[%s244 + $0x80] sm:$0xff] %v1554
        %1633 = vst [vmem:[%s244 + $0x88] sm:$0xff] %v1557
        %1634 = vst [vmem:[%s244 + $0x90] sm:$0xff] %v1562
        %1635 = vst [vmem:[%s244 + $0x98] sm:$0xff] %v1565
        %1636 = vst [vmem:[%s244 + $0xa0] sm:$0xff] %v1570
        %1637 = vst [vmem:[%s244 + $0xa8] sm:$0xff] %v1573
        %1638 = vst [vmem:[%s244 + $0xb0] sm:$0xff] %v1578
        %1639 = vst [vmem:[%s244 + $0xb8] sm:$0xff] %v1581
        %1640 = vst [vmem:[%s244 + $0xc0] sm:$0xff] %v1586
        %1641 = vst [vmem:[%s244 + $0xc8] sm:$0xff] %v1589
        %1642 = vst [vmem:[%s244 + $0xd0] sm:$0xff] %v1594
        %1643 = vst [vmem:[%s244 + $0xd8] sm:$0xff] %v1597
        %1644 = vst [vmem:[%s244 + $0xe0] sm:$0xff] %v1602
        %1645 = vst [vmem:[%s244 + $0xe8] sm:$0xff] %v1605
        %1646 = vst [vmem:[%s244 + $0xf0] sm:$0xff] %v1610
        %1647 = vst [vmem:[%s244 + $0xf8] sm:$0xff] %v1613
        %s1648 = sand.u32 %s159, 1
        %s1649 = scalar_lea.sflag [#allocation3], %s1648
        %s1650 = sand.u32 %s159, 1
        %s1651 = smul.addr %s1650, 256
        %s1652 = scalar_lea.vmem [#allocation2], %s1651
        // Predicated region
        $region45: #{_lambda_.1} parent=43 // pred_check
          %p1653 = pneg %p169
        $region46: #{_lambda_.1} parent=43 // pred_check_branch
          %1655 = sbr.rel (%p1653) target = $region48
        $region47: #{_lambda_.1} parent=43 // pred_region
          %s1657 = ssub.s32 4096, 4096
          %1658 = vsyncadd %s1649, %s1657
          %s1659 = smul.addr %s20, 32
          %s1660 = smul.addr %s1659, 128
          %s1661 = scalar_lea.hbm %s6, %s1660
          %s1662 = sshll.u32 %s1652, 4
          %s1663 = int_to_ptr.vmem [resolvable:$true] %s1662
          %1668 = dma.vmem_to_hbm [thread:$0]  %s1663, 4096, %s1661, %s1649, 128, 128, 8
        $region48: #{_lambda_.1} parent=43 // pred_fallthru
          _
      $region44: #{_lambda_.1} parent=5 // pred_fallthru
        _
      %p1669 = scmp.le.s32.totalorder 2, %s15
      // Predicated region
      $region49: #{_lambda_.1} parent=5 // pred_check
        %p1670 = pneg %p1669
      $region50: #{_lambda_.1} parent=5 // pred_check_branch
        %1672 = sbr.rel (%p1670) target = $region52
      $region51: #{_lambda_.1} parent=5 // pred_region
        %s1673 = ssub.s32 %s15, 2
        // Predicated region
        $region53: #{_lambda_.1} parent=51 // pred_check
          %p1674 = pneg %p175
        $region54: #{_lambda_.1} parent=51 // pred_check_branch
          %1676 = sbr.rel (%p1674) target = $region56
        $region55: #{_lambda_.1} parent=51 // pred_region
          %s1677 = sand.u32 %s160, 1
          %s1678 = scalar_lea.sflag [#allocation3], %s1677
          %s1679 = sand.u32 %s160, 1
          %s1680 = smul.addr %s1679, 256
          %s1681 = scalar_lea.vmem [#allocation2], %s1680
          %1682 = dma.done %s1678, 4096
        $region56: #{_lambda_.1} parent=51 // pred_fallthru
          _
      $region52: #{_lambda_.1} parent=5 // pred_fallthru
        _
    $region6: #{_lambda_.1} parent=1 // loop_footer
      %s19 = sadd.s32 1, %s15
    $region7: #{_lambda_.1} parent=1 // loop_footer_branch
      %14 = sbr.rel target = $region3
    $region8: #{_lambda_.1} parent=1 // loop_exit
      _
    %1683 = vsyncpa [#allocation3], 1
    %s1684 = scalar_lea.sflag [#allocation3], 1
    %1685 = vsyncpa %s1684, 1

</llo_original>
